<compile_context>
chip_gen: v7x
topology: tpu7x:2x2x1
jax: 0.10.0
libtpu: 0.0.40
codegen_flags: <defaults>
</compile_context>

<pallas_src>
import functools

import jax
import jax.numpy as jnp
from jax.experimental import pallas as pl
from jax.experimental.pallas import tpu as pltpu

FEATURE_DIM = 64
HIDDEN_DIMS = (256, 128, 64, 32)
OUT_PAD = 128  # lane-dense padded width of the last layer (real width = 32)


def _round_up(x, m):
    return (x + m - 1) // m * m


def _mlp_aux_kernel(x_ref,
                    w1_ref, b1_ref,
                    w2_ref, b2_ref,
                    w3_ref, b3_ref,
                    w4_ref, b4_ref,
                    o_ref):
    """4-layer MLP hot path: MXU matmuls + VPU adds + EUP tanh, all in VMEM."""
    x = x_ref[...]  # already f32

    h = jnp.tanh(jnp.dot(x, w1_ref[...],
                         preferred_element_type=jnp.float32) + b1_ref[...])
    h = jnp.tanh(jnp.dot(h, w2_ref[...],
                         preferred_element_type=jnp.float32) + b2_ref[...])
    h = jnp.tanh(jnp.dot(h, w3_ref[...],
                         preferred_element_type=jnp.float32) + b3_ref[...])
    h = jnp.tanh(jnp.dot(h, w4_ref[...],
                         preferred_element_type=jnp.float32) + b4_ref[...])

    o_ref[...] = h.astype(o_ref.dtype)


@functools.partial(jax.jit, static_argnames=("block_b",))
def mlp_extractor_aux(features, params, block_b=512):
    """features: (B, feature_dim) float32.  params: dict of weights/biases.

    Returns (B, 32) float32, matching MlpExtractor_Aux.forward.
    The wrapper pads the batch to a multiple of the block size and zero-pads
    the last layer to 128 lane-dense output columns; both paddings are
    stripped before returning.
    """
    B, F = features.shape
    w1, b1 = params["w1"], params["b1"]
    w2, b2 = params["w2"], params["b2"]
    w3, b3 = params["w3"], params["b3"]
    w4, b4 = params["w4"], params["b4"]
    out_dim = w4.shape[1]  # 32

    # Effective block: at least 256 rows (MXU-friendly on v5e/v6e/v7x) but no
    # larger than needed for small batches.  Weights are ~230 KiB f32, so even
    # block_b=4096 is far under VMEM limits on all generations.
    bb = min(block_b, _round_up(B, 256))
    Bp = _round_up(B, bb)
    if Bp != B:
        features = jnp.pad(features, ((0, Bp - B), (0, 0)))

    # Lane-dense final layer: zero-pad (64, 32) -> (64, 128), (1, 32) -> (1, 128).
    w4p = jnp.pad(w4, ((0, 0), (0, OUT_PAD - out_dim)))
    b4p = jnp.pad(b4, ((0, 0), (0, OUT_PAD - out_dim)))

    grid = (Bp // bb,)

    # Weights/biases are tiny -> keep full copies resident in VMEM every step.
    def full(shape):
        return pl.BlockSpec(shape, lambda i: (0, 0))

    d1, d2, d3 = HIDDEN_DIMS[0], HIDDEN_DIMS[1], HIDDEN_DIMS[2]
    weight_bytes = 4 * (F * d1 + d1 + d1 * d2 + d2 + d2 * d3 + d3
                        + d3 * OUT_PAD + OUT_PAD)
    cost = pl.CostEstimate(
        flops=2 * Bp * (F * d1 + d1 * d2 + d2 * d3 + d3 * OUT_PAD),
        transcendentals=Bp * (d1 + d2 + d3 + OUT_PAD),
        bytes_accessed=Bp * (F + OUT_PAD) * 4 + weight_bytes,
    )

    out_padded = pl.pallas_call(
        _mlp_aux_kernel,
        out_shape=jax.ShapeDtypeStruct((Bp, OUT_PAD), jnp.float32),
        grid_spec=pltpu.PrefetchScalarGridSpec(
            num_scalar_prefetch=0,
            grid=grid,
            in_specs=[
                pl.BlockSpec((bb, F), lambda i: (i, 0)),
                full(w1.shape), full(b1.shape),
                full(w2.shape), full(b2.shape),
                full(w3.shape), full(b3.shape),
                full(w4p.shape), full(b4p.shape),
            ],
            out_specs=pl.BlockSpec((bb, OUT_PAD), lambda i: (i, 0)),
        ),
        compiler_params=pltpu.CompilerParams(
            dimension_semantics=("parallel",)),
        cost_estimate=cost,
    )(features, w1, b1, w2, b2, w3, b3, w4p, b4p)

    return out_padded[:B, :out_dim]


def init_params(key, feature_dim=FEATURE_DIM, dims=HIDDEN_DIMS):
    """Deterministic PyTorch-style Linear init (uniform +-1/sqrt(fan_in)).

    Weights stored as (in_dim, out_dim); biases as (1, out_dim) to stay 2-D
    for TPU layout friendliness.
    """
    params = {}
    in_dim = feature_dim
    for idx, out_dim in enumerate(dims, start=1):
        key, kw, kb = jax.random.split(key, 3)
        bound = 1.0 / jnp.sqrt(jnp.float32(in_dim))
        params[f"w{idx}"] = jax.random.uniform(
            kw, (in_dim, out_dim), jnp.float32, -bound, bound)
        params[f"b{idx}"] = jax.random.uniform(
            kb, (1, out_dim), jnp.float32, -bound, bound)
        in_dim = out_dim
    return params


def reference_forward(features, params):
    """Pure-JAX reference of aux_net for a correctness check."""
    h = features
    for idx in range(1, 5):
        h = jnp.tanh(h @ params[f"w{idx}"] + params[f"b{idx}"])
    return h


if __name__ == "__main__":
    key = jax.random.PRNGKey(0)
    key, kx = jax.random.split(key)

    B = 8  # small test batch; wrapper pads to an MXU-friendly block internally
    features = jax.random.normal(kx, (B, FEATURE_DIM), dtype=jnp.float32)
    params = init_params(key)

    out = mlp_extractor_aux(features, params)
    out = jax.block_until_ready(out)

    ref = reference_forward(features, params)
    assert out.shape == (B, HIDDEN_DIMS[-1])
    assert jnp.allclose(out, ref, atol=1e-5, rtol=1e-5), "mismatch vs reference"

    print("KERNEL_OK")
</pallas_src>

<mosaic_0001>
module attributes {stable_mosaic.version = 11 : i64} {
  func.func @_mlp_aux_kernel(%arg0: i32, %arg1: memref<256x64xf32, #tpu.memory_space<vmem>>, %arg2: memref<64x256xf32, #tpu.memory_space<vmem>>, %arg3: memref<1x256xf32, #tpu.memory_space<vmem>>, %arg4: memref<256x128xf32, #tpu.memory_space<vmem>>, %arg5: memref<1x128xf32, #tpu.memory_space<vmem>>, %arg6: memref<128x64xf32, #tpu.memory_space<vmem>>, %arg7: memref<1x64xf32, #tpu.memory_space<vmem>>, %arg8: memref<64x128xf32, #tpu.memory_space<vmem>>, %arg9: memref<1x128xf32, #tpu.memory_space<vmem>>, %arg10: memref<256x128xf32, #tpu.memory_space<vmem>>) attributes {dimension_semantics = [#tpu.dimension_semantics<parallel>], iteration_bounds = array<i64: 1>, scalar_prefetch = 0 : i64, scratch_operands = 0 : i64, tpu.core_type = #tpu.core_type<tc>, window_params = [{transform_indices = @transform_0, window_bounds = array<i64: 256, 64>}, {pipeline_mode = #tpu.pipeline_mode<synchronous>, transform_indices = @transform_1, window_bounds = array<i64: 64, 256>}, {pipeline_mode = #tpu.pipeline_mode<synchronous>, transform_indices = @transform_2, window_bounds = array<i64: 1, 256>}, {pipeline_mode = #tpu.pipeline_mode<synchronous>, transform_indices = @transform_3, window_bounds = array<i64: 256, 128>}, {pipeline_mode = #tpu.pipeline_mode<synchronous>, transform_indices = @transform_4, window_bounds = array<i64: 1, 128>}, {pipeline_mode = #tpu.pipeline_mode<synchronous>, transform_indices = @transform_5, window_bounds = array<i64: 128, 64>}, {pipeline_mode = #tpu.pipeline_mode<synchronous>, transform_indices = @transform_6, window_bounds = array<i64: 1, 64>}, {pipeline_mode = #tpu.pipeline_mode<synchronous>, transform_indices = @transform_7, window_bounds = array<i64: 64, 128>}, {pipeline_mode = #tpu.pipeline_mode<synchronous>, transform_indices = @transform_8, window_bounds = array<i64: 1, 128>}, {transform_indices = @transform_9, window_bounds = array<i64: 256, 128>}]} {
    %c0 = arith.constant 0 : index
    %c0_0 = arith.constant 0 : index
    %0 = vector.load %arg1[%c0, %c0_0] : memref<256x64xf32, #tpu.memory_space<vmem>>, vector<256x64xf32>
    %c0_1 = arith.constant 0 : index
    %c0_2 = arith.constant 0 : index
    %1 = vector.load %arg2[%c0_1, %c0_2] : memref<64x256xf32, #tpu.memory_space<vmem>>, vector<64x256xf32>
    %cst = arith.constant dense<0.000000e+00> : vector<256x256xf32>
    %2 = tpu.matmul %0, %1, %cst {dimension_numbers = #tpu.dot_dimension_numbers<[1], [0], [0], [1], [0, 0, 1, 1], [], []>} : vector<256x64xf32>, vector<64x256xf32>, vector<256x256xf32> -> vector<256x256xf32>
    %c0_3 = arith.constant 0 : index
    %c0_4 = arith.constant 0 : index
    %3 = vector.load %arg3[%c0_3, %c0_4] : memref<1x256xf32, #tpu.memory_space<vmem>>, vector<1x256xf32>
    %4 = vector.broadcast %3 : vector<1x256xf32> to vector<256x256xf32>
    %5 = arith.addf %2, %4 : vector<256x256xf32>
    %6 = math.tanh %5 : vector<256x256xf32>
    %c0_5 = arith.constant 0 : index
    %c0_6 = arith.constant 0 : index
    %7 = vector.load %arg4[%c0_5, %c0_6] : memref<256x128xf32, #tpu.memory_space<vmem>>, vector<256x128xf32>
    %cst_7 = arith.constant dense<0.000000e+00> : vector<256x128xf32>
    %8 = tpu.matmul %6, %7, %cst_7 {dimension_numbers = #tpu.dot_dimension_numbers<[1], [0], [0], [1], [0, 0, 1, 1], [], []>} : vector<256x256xf32>, vector<256x128xf32>, vector<256x128xf32> -> vector<256x128xf32>
    %c0_8 = arith.constant 0 : index
    %c0_9 = arith.constant 0 : index
    %9 = vector.load %arg5[%c0_8, %c0_9] : memref<1x128xf32, #tpu.memory_space<vmem>>, vector<1x128xf32>
    %10 = vector.broadcast %9 : vector<1x128xf32> to vector<256x128xf32>
    %11 = arith.addf %8, %10 : vector<256x128xf32>
    %12 = math.tanh %11 : vector<256x128xf32>
    %c0_10 = arith.constant 0 : index
    %c0_11 = arith.constant 0 : index
    %13 = vector.load %arg6[%c0_10, %c0_11] : memref<128x64xf32, #tpu.memory_space<vmem>>, vector<128x64xf32>
    %cst_12 = arith.constant dense<0.000000e+00> : vector<256x64xf32>
    %14 = tpu.matmul %12, %13, %cst_12 {dimension_numbers = #tpu.dot_dimension_numbers<[1], [0], [0], [1], [0, 0, 1, 1], [], []>} : vector<256x128xf32>, vector<128x64xf32>, vector<256x64xf32> -> vector<256x64xf32>
    %c0_13 = arith.constant 0 : index
    %c0_14 = arith.constant 0 : index
    %15 = vector.load %arg7[%c0_13, %c0_14] : memref<1x64xf32, #tpu.memory_space<vmem>>, vector<1x64xf32>
    %16 = vector.broadcast %15 : vector<1x64xf32> to vector<256x64xf32>
    %17 = arith.addf %14, %16 : vector<256x64xf32>
    %18 = math.tanh %17 : vector<256x64xf32>
    %c0_15 = arith.constant 0 : index
    %c0_16 = arith.constant 0 : index
    %19 = vector.load %arg8[%c0_15, %c0_16] : memref<64x128xf32, #tpu.memory_space<vmem>>, vector<64x128xf32>
    %cst_17 = arith.constant dense<0.000000e+00> : vector<256x128xf32>
    %20 = tpu.matmul %18, %19, %cst_17 {dimension_numbers = #tpu.dot_dimension_numbers<[1], [0], [0], [1], [0, 0, 1, 1], [], []>} : vector<256x64xf32>, vector<64x128xf32>, vector<256x128xf32> -> vector<256x128xf32>
    %c0_18 = arith.constant 0 : index
    %c0_19 = arith.constant 0 : index
    %21 = vector.load %arg9[%c0_18, %c0_19] : memref<1x128xf32, #tpu.memory_space<vmem>>, vector<1x128xf32>
    %22 = vector.broadcast %21 : vector<1x128xf32> to vector<256x128xf32>
    %23 = arith.addf %20, %22 : vector<256x128xf32>
    %24 = math.tanh %23 : vector<256x128xf32>
    %c0_20 = arith.constant 0 : index
    %c0_21 = arith.constant 0 : index
    %25 = vector.load %arg10[%c0_20, %c0_21] : memref<256x128xf32, #tpu.memory_space<vmem>>, vector<256x128xf32>
    tpu.vector_store %arg10[%c0_20, %c0_21], %24 {strides = array<i32>} : memref<256x128xf32, #tpu.memory_space<vmem>>, vector<256x128xf32>,
    return
  }
  func.func @transform_0(%arg0: i32) -> (i32, i32) {
    %c0_i32 = arith.constant 0 : i32
    %c0_i32_0 = arith.constant 0 : i32
    return %arg0, %c0_i32 : i32, i32
  }
  func.func @transform_1(%arg0: i32) -> (i32, i32) {
    %c0_i32 = arith.constant 0 : i32
    %c0_i32_0 = arith.constant 0 : i32
    %c0_i32_1 = arith.constant 0 : i32
    return %c0_i32, %c0_i32_0 : i32, i32
  }
  func.func @transform_2(%arg0: i32) -> (i32, i32) {
    %c0_i32 = arith.constant 0 : i32
    %c0_i32_0 = arith.constant 0 : i32
    %c0_i32_1 = arith.constant 0 : i32
    return %c0_i32, %c0_i32_0 : i32, i32
  }
  func.func @transform_3(%arg0: i32) -> (i32, i32) {
    %c0_i32 = arith.constant 0 : i32
    %c0_i32_0 = arith.constant 0 : i32
    %c0_i32_1 = arith.constant 0 : i32
    return %c0_i32, %c0_i32_0 : i32, i32
  }
  func.func @transform_4(%arg0: i32) -> (i32, i32) {
    %c0_i32 = arith.constant 0 : i32
    %c0_i32_0 = arith.constant 0 : i32
    %c0_i32_1 = arith.constant 0 : i32
    return %c0_i32, %c0_i32_0 : i32, i32
  }
  func.func @transform_5(%arg0: i32) -> (i32, i32) {
    %c0_i32 = arith.constant 0 : i32
    %c0_i32_0 = arith.constant 0 : i32
    %c0_i32_1 = arith.constant 0 : i32
    return %c0_i32, %c0_i32_0 : i32, i32
  }
  func.func @transform_6(%arg0: i32) -> (i32, i32) {
    %c0_i32 = arith.constant 0 : i32
    %c0_i32_0 = arith.constant 0 : i32
    %c0_i32_1 = arith.constant 0 : i32
    return %c0_i32, %c0_i32_0 : i32, i32
  }
  func.func @transform_7(%arg0: i32) -> (i32, i32) {
    %c0_i32 = arith.constant 0 : i32
    %c0_i32_0 = arith.constant 0 : i32
    %c0_i32_1 = arith.constant 0 : i32
    return %c0_i32, %c0_i32_0 : i32, i32
  }
  func.func @transform_8(%arg0: i32) -> (i32, i32) {
    %c0_i32 = arith.constant 0 : i32
    %c0_i32_0 = arith.constant 0 : i32
    %c0_i32_1 = arith.constant 0 : i32
    return %c0_i32, %c0_i32_0 : i32, i32
  }
  func.func @transform_9(%arg0: i32) -> (i32, i32) {
    %c0_i32 = arith.constant 0 : i32
    %c0_i32_0 = arith.constant 0 : i32
    return %arg0, %c0_i32 : i32, i32
  }
}

</mosaic_0001>

<llo_original>
// kernel: mlp_extractor_aux.1
$region0: #{mlp_extractor_aux.1}
  #allocation0 [shape = 'u32[]', space=smem, size = 0x4, offset = 0x4, fixed_abs, tag = 'smem constant byte address 0x4 - core index']
  #allocation1 [shape = 'u32[144,128]{1,0:T(1,128)}', space=vmem, size = 0x12000, scoped, tag = 'internal scratch']
  %s0 = inlined_call_operand.vmem [shape: f32[256,64], index: 0, kind: input, shape index: {}]
  %s1 = inlined_call_operand.vmem [shape: f32[64,256], index: 1, kind: input, shape index: {}]
  %s2 = inlined_call_operand.vmem [shape: f32[1,256], index: 2, kind: input, shape index: {}]
  %s3 = inlined_call_operand.vmem [shape: f32[256,128], index: 3, kind: input, shape index: {}]
  %s4 = inlined_call_operand.vmem [shape: f32[1,128], index: 4, kind: input, shape index: {}]
  %s5 = inlined_call_operand.vmem [shape: f32[128,64], index: 5, kind: input, shape index: {}]
  %s6 = inlined_call_operand.vmem [shape: f32[1,64], index: 6, kind: input, shape index: {}]
  %s7 = inlined_call_operand.vmem [shape: f32[64,128], index: 7, kind: input, shape index: {}]
  %s8 = inlined_call_operand.vmem [shape: f32[1,128], index: 8, kind: input, shape index: {}]
  %s9 = inlined_call_operand.vmem [shape: f32[256,128], index: 9, kind: output, shape index: {}]
  %s10 = sld [smem:[#allocation0]]
  $region46: #{mlp_extractor_aux.1} parent=0
    _
  %s12 = ssub.s32 1, %s10
  %s13 = scalar_select 0, %s12, %s10
  // Predicated region
  $region2: #{mlp_extractor_aux.1} parent=0 // pred_check
    _
  $region3: #{mlp_extractor_aux.1} parent=0 // pred_check_branch
    %15 = sbr.rel (0) target = $region5
  $region4: #{mlp_extractor_aux.1} parent=0 // pred_region
    _
  $region5: #{mlp_extractor_aux.1} parent=0 // pred_fallthru
    _
  // Predicated region
  $region6: #{mlp_extractor_aux.1} parent=0 // pred_check
    _
  $region7: #{mlp_extractor_aux.1} parent=0 // pred_check_branch
    %17 = sbr.rel (0) target = $region9
  $region8: #{mlp_extractor_aux.1} parent=0 // pred_region
    _
  $region9: #{mlp_extractor_aux.1} parent=0 // pred_fallthru
    _
  // Predicated region
  $region10: #{mlp_extractor_aux.1} parent=0 // pred_check
    _
  $region11: #{mlp_extractor_aux.1} parent=0 // pred_check_branch
    %19 = sbr.rel (0) target = $region13
  $region12: #{mlp_extractor_aux.1} parent=0 // pred_region
    _
  $region13: #{mlp_extractor_aux.1} parent=0 // pred_fallthru
    _
  // Predicated region
  $region14: #{mlp_extractor_aux.1} parent=0 // pred_check
    _
  $region15: #{mlp_extractor_aux.1} parent=0 // pred_check_branch
    %21 = sbr.rel (0) target = $region17
  $region16: #{mlp_extractor_aux.1} parent=0 // pred_region
    _
  $region17: #{mlp_extractor_aux.1} parent=0 // pred_fallthru
    _
  // Predicated region
  $region18: #{mlp_extractor_aux.1} parent=0 // pred_check
    _
  $region19: #{mlp_extractor_aux.1} parent=0 // pred_check_branch
    %23 = sbr.rel (0) target = $region21
  $region20: #{mlp_extractor_aux.1} parent=0 // pred_region
    _
  $region21: #{mlp_extractor_aux.1} parent=0 // pred_fallthru
    _
  // Predicated region
  $region22: #{mlp_extractor_aux.1} parent=0 // pred_check
    _
  $region23: #{mlp_extractor_aux.1} parent=0 // pred_check_branch
    %25 = sbr.rel (0) target = $region25
  $region24: #{mlp_extractor_aux.1} parent=0 // pred_region
    _
  $region25: #{mlp_extractor_aux.1} parent=0 // pred_fallthru
    _
  // Predicated region
  $region26: #{mlp_extractor_aux.1} parent=0 // pred_check
    _
  $region27: #{mlp_extractor_aux.1} parent=0 // pred_check_branch
    %27 = sbr.rel (0) target = $region29
  $region28: #{mlp_extractor_aux.1} parent=0 // pred_region
    _
  $region29: #{mlp_extractor_aux.1} parent=0 // pred_fallthru
    _
  // Predicated region
  $region30: #{mlp_extractor_aux.1} parent=0 // pred_check
    _
  $region31: #{mlp_extractor_aux.1} parent=0 // pred_check_branch
    %29 = sbr.rel (0) target = $region33
  $region32: #{mlp_extractor_aux.1} parent=0 // pred_region
    _
  $region33: #{mlp_extractor_aux.1} parent=0 // pred_fallthru
    _
  // Predicated region
  $region34: #{mlp_extractor_aux.1} parent=0 // pred_check
    _
  $region35: #{mlp_extractor_aux.1} parent=0 // pred_check_branch
    %31 = sbr.rel (0) target = $region37
  $region36: #{mlp_extractor_aux.1} parent=0 // pred_region
    _
  $region37: #{mlp_extractor_aux.1} parent=0 // pred_fallthru
    _
  %v32 = vld [vmem:[%s0] sm:$0xff]
  %v33 = vld [vmem:[%s0 + $0x8] sm:$0xff]
  %v34 = vld [vmem:[%s0 + $0x10] sm:$0xff]
  %v35 = vld [vmem:[%s0 + $0x18] sm:$0xff]
  %v36 = vld [vmem:[%s0 + $0x20] sm:$0xff]
  %v37 = vld [vmem:[%s0 + $0x28] sm:$0xff]
  %v38 = vld [vmem:[%s0 + $0x30] sm:$0xff]
  %v39 = vld [vmem:[%s0 + $0x38] sm:$0xff]
  %v40 = vld [vmem:[%s0 + $0x40] sm:$0xff]
  %v41 = vld [vmem:[%s0 + $0x48] sm:$0xff]
  %v42 = vld [vmem:[%s0 + $0x50] sm:$0xff]
  %v43 = vld [vmem:[%s0 + $0x58] sm:$0xff]
  %v44 = vld [vmem:[%s0 + $0x60] sm:$0xff]
  %v45 = vld [vmem:[%s0 + $0x68] sm:$0xff]
  %v46 = vld [vmem:[%s0 + $0x70] sm:$0xff]
  %v47 = vld [vmem:[%s0 + $0x78] sm:$0xff]
  %v48 = vld [vmem:[%s0 + $0x80] sm:$0xff]
  %v49 = vld [vmem:[%s0 + $0x88] sm:$0xff]
  %v50 = vld [vmem:[%s0 + $0x90] sm:$0xff]
  %v51 = vld [vmem:[%s0 + $0x98] sm:$0xff]
  %v52 = vld [vmem:[%s0 + $0xa0] sm:$0xff]
  %v53 = vld [vmem:[%s0 + $0xa8] sm:$0xff]
  %v54 = vld [vmem:[%s0 + $0xb0] sm:$0xff]
  %v55 = vld [vmem:[%s0 + $0xb8] sm:$0xff]
  %v56 = vld [vmem:[%s0 + $0xc0] sm:$0xff]
  %v57 = vld [vmem:[%s0 + $0xc8] sm:$0xff]
  %v58 = vld [vmem:[%s0 + $0xd0] sm:$0xff]
  %v59 = vld [vmem:[%s0 + $0xd8] sm:$0xff]
  %v60 = vld [vmem:[%s0 + $0xe0] sm:$0xff]
  %v61 = vld [vmem:[%s0 + $0xe8] sm:$0xff]
  %v62 = vld [vmem:[%s0 + $0xf0] sm:$0xff]
  %v63 = vld [vmem:[%s0 + $0xf8] sm:$0xff]
  %v64 = vld [vmem:[%s1] sm:$0xff]
  %v65 = vld [vmem:[%s1 + $0x8] sm:$0xff]
  %v66 = vld [vmem:[%s1 + $0x10] sm:$0xff]
  %v67 = vld [vmem:[%s1 + $0x18] sm:$0xff]
  %v68 = vld [vmem:[%s1 + $0x20] sm:$0xff]
  %v69 = vld [vmem:[%s1 + $0x28] sm:$0xff]
  %v70 = vld [vmem:[%s1 + $0x30] sm:$0xff]
  %v71 = vld [vmem:[%s1 + $0x38] sm:$0xff]
  %v72 = vld [vmem:[%s1 + $0x40] sm:$0xff]
  %v73 = vld [vmem:[%s1 + $0x48] sm:$0xff]
  %v74 = vld [vmem:[%s1 + $0x50] sm:$0xff]
  %v75 = vld [vmem:[%s1 + $0x58] sm:$0xff]
  %v76 = vld [vmem:[%s1 + $0x60] sm:$0xff]
  %v77 = vld [vmem:[%s1 + $0x68] sm:$0xff]
  %v78 = vld [vmem:[%s1 + $0x70] sm:$0xff]
  %v79 = vld [vmem:[%s1 + $0x78] sm:$0xff]
  %v80 = vld [vmem:[%s2] sm:$0x3]
  %v82 = vlaneseq
  %v83 = vshrl.u32 %v82, 7
  %v84 = vsub.s32 0, %v83
  %v85 = vrot.slane %v80, %v84
  %v86 = vlaneseq
  %v87 = vshrl.u32 %v86, 7
  %v88 = vsub.s32 1, %v87
  %v89 = vrot.slane %v80, %v88
  %vm92 = vcmask 523264
  %v94 = vsel %vm92, %v32, 0
  %v97 = vsel %vm92, %v33, 0
  %v100 = vsel %vm92, %v34, 0
  %v103 = vsel %vm92, %v35, 0
  %v106 = vsel %vm92, %v36, 0
  %v109 = vsel %vm92, %v37, 0
  %v112 = vsel %vm92, %v38, 0
  %v115 = vsel %vm92, %v39, 0
  %v118 = vsel %vm92, %v40, 0
  %v121 = vsel %vm92, %v41, 0
  %v124 = vsel %vm92, %v42, 0
  %v127 = vsel %vm92, %v43, 0
  %v130 = vsel %vm92, %v44, 0
  %v133 = vsel %vm92, %v45, 0
  %v136 = vsel %vm92, %v46, 0
  %v139 = vsel %vm92, %v47, 0
  %v142 = vsel %vm92, %v48, 0
  %v145 = vsel %vm92, %v49, 0
  %v148 = vsel %vm92, %v50, 0
  %v151 = vsel %vm92, %v51, 0
  %v154 = vsel %vm92, %v52, 0
  %v157 = vsel %vm92, %v53, 0
  %v160 = vsel %vm92, %v54, 0
  %v163 = vsel %vm92, %v55, 0
  %v166 = vsel %vm92, %v56, 0
  %v169 = vsel %vm92, %v57, 0
  %v172 = vsel %vm92, %v58, 0
  %v175 = vsel %vm92, %v59, 0
  %v178 = vsel %vm92, %v60, 0
  %v181 = vsel %vm92, %v61, 0
  %v184 = vsel %vm92, %v62, 0
  %v187 = vsel %vm92, %v63, 0
  %189 = vmatprep.subr.mxu0 %v65
  %190 = vmatpush1.msra.mxu0 %v64
  %191 = vmatprep.subr.mxu0 %v67
  %192 = vmatpush1.msra.mxu0 %v66
  %193 = vmatprep.subr.mxu0 %v69
  %194 = vmatpush1.msra.mxu0 %v68
  %195 = vmatprep.subr.mxu0 %v71
  %196 = vmatpush1.msra.mxu0 %v70
  %197 = vmatprep.subr.mxu0 %v73
  %198 = vmatpush1.msra.mxu0 %v72
  %199 = vmatprep.subr.mxu0 %v75
  %200 = vmatpush1.msra.mxu0 %v74
  %201 = vmatprep.subr.mxu0 %v77
  %202 = vmatpush1.msra.mxu0 %v76
  %203 = vmatprep.subr.mxu0 %v79
  %204 = vmatpush1.msra.mxu0 %v78
  %205 = vmatprep.subr.mxu0 0.0
  %206 = vmatpush1.msra.mxu0 0.0
  %207 = vmatprep.subr.mxu0 0.0
  %208 = vmatpush1.msra.mxu0 0.0
  %209 = vmatprep.subr.mxu0 0.0
  %210 = vmatpush1.msra.mxu0 0.0
  %211 = vmatprep.subr.mxu0 0.0
  %212 = vmatpush1.msra.mxu0 0.0
  %213 = vmatprep.subr.mxu0 0.0
  %214 = vmatpush1.msra.mxu0 0.0
  %215 = vmatprep.subr.mxu0 0.0
  %216 = vmatpush1.msra.mxu0 0.0
  %217 = vmatprep.subr.mxu0 0.0
  %218 = vmatpush1.msra.mxu0 0.0
  %219 = vmatprep.subr.mxu0 0.0
  %220 = vmatpush1.msra.mxu0 0.0
  %221 = vmatprep.subr.mxu0 0.0
  %222 = vmatpush1.msra.mxu0 0.0
  %223 = vmatprep.subr.mxu0 0.0
  %224 = vmatpush1.msra.mxu0 0.0
  %225 = vmatprep.subr.mxu0 0.0
  %226 = vmatpush1.msra.mxu0 0.0
  %227 = vmatprep.subr.mxu0 0.0
  %228 = vmatpush1.msra.mxu0 0.0
  %229 = vmatprep.subr.mxu0 0.0
  %230 = vmatpush1.msra.mxu0 0.0
  %231 = vmatprep.subr.mxu0 0.0
  %232 = vmatpush1.msra.mxu0 0.0
  %233 = vmatprep.subr.mxu0 0.0
  %234 = vmatpush1.msra.mxu0 0.0
  %235 = vmatprep.subr.mxu0 0.0
  %236 = vmatpush1.msra.mxu0 0.0
  %237 = vmatprep.subr.mxu0 0.0
  %238 = vmatpush1.msra.mxu0 0.0
  %239 = vmatprep.subr.mxu0 0.0
  %240 = vmatpush1.msra.mxu0 0.0
  %241 = vmatprep.subr.mxu0 0.0
  %242 = vmatpush1.msra.mxu0 0.0
  %243 = vmatprep.subr.mxu0 0.0
  %244 = vmatpush1.msra.mxu0 0.0
  %245 = vmatprep.subr.mxu0 0.0
  %246 = vmatpush1.msra.mxu0 0.0
  %247 = vmatprep.subr.mxu0 0.0
  %248 = vmatpush1.msra.mxu0 0.0
  %249 = vmatprep.subr.mxu0 0.0
  %250 = vmatpush1.msra.mxu0 0.0
  %251 = vmatprep.subr.mxu0 0.0
  %252 = vmatpush1.msra.mxu0 0.0
  %253 = vmatprep.mubr.f32.mxu0 0.0
  %254 = vmatmul.mubr.f32.gmra.mrb[0].mxu0 %v94
  %v255 = vpop.f32.mrb[0].mxu0
  %v256 = vadd.f32 %v85, %v255
  %v257 = vpop.f32.mrb[0].mxu0
  %v258 = vadd.f32 %v89, %v257
  %259 = vmatprep.mubr.f32.mxu0 0.0
  %260 = vmatmul.mubr.f32.gmra.mrb[0].mxu0 %v97
  %v261 = vpop.f32.mrb[0].mxu0
  %v262 = vadd.f32 %v85, %v261
  %v263 = vpop.f32.mrb[0].mxu0
  %v264 = vadd.f32 %v89, %v263
  %265 = vmatprep.mubr.f32.mxu0 0.0
  %266 = vmatmul.mubr.f32.gmra.mrb[0].mxu0 %v100
  %v267 = vpop.f32.mrb[0].mxu0
  %v268 = vadd.f32 %v85, %v267
  %v269 = vpop.f32.mrb[0].mxu0
  %v270 = vadd.f32 %v89, %v269
  %271 = vmatprep.mubr.f32.mxu0 0.0
  %272 = vmatmul.mubr.f32.gmra.mrb[0].mxu0 %v103
  %v273 = vpop.f32.mrb[0].mxu0
  %v274 = vadd.f32 %v85, %v273
  %v275 = vpop.f32.mrb[0].mxu0
  %v276 = vadd.f32 %v89, %v275
  %277 = vmatprep.mubr.f32.mxu0 0.0
  %278 = vmatmul.mubr.f32.gmra.mrb[0].mxu0 %v106
  %v279 = vpop.f32.mrb[0].mxu0
  %v280 = vadd.f32 %v85, %v279
  %v281 = vpop.f32.mrb[0].mxu0
  %v282 = vadd.f32 %v89, %v281
  %283 = vmatprep.mubr.f32.mxu0 0.0
  %284 = vmatmul.mubr.f32.gmra.mrb[0].mxu0 %v109
  %v285 = vpop.f32.mrb[0].mxu0
  %v286 = vadd.f32 %v85, %v285
  %v287 = vpop.f32.mrb[0].mxu0
  %v288 = vadd.f32 %v89, %v287
  %289 = vmatprep.mubr.f32.mxu0 0.0
  %290 = vmatmul.mubr.f32.gmra.mrb[0].mxu0 %v112
  %v291 = vpop.f32.mrb[0].mxu0
  %v292 = vadd.f32 %v85, %v291
  %v293 = vpop.f32.mrb[0].mxu0
  %v294 = vadd.f32 %v89, %v293
  %295 = vmatprep.mubr.f32.mxu0 0.0
  %296 = vmatmul.mubr.f32.gmra.mrb[0].mxu0 %v115
  %v297 = vpop.f32.mrb[0].mxu0
  %v298 = vadd.f32 %v85, %v297
  %v299 = vpop.f32.mrb[0].mxu0
  %v300 = vadd.f32 %v89, %v299
  %301 = vmatprep.mubr.f32.mxu0 0.0
  %302 = vmatmul.mubr.f32.gmra.mrb[0].mxu0 %v118
  %v303 = vpop.f32.mrb[0].mxu0
  %v304 = vadd.f32 %v85, %v303
  %v305 = vpop.f32.mrb[0].mxu0
  %v306 = vadd.f32 %v89, %v305
  %307 = vmatprep.mubr.f32.mxu0 0.0
  %308 = vmatmul.mubr.f32.gmra.mrb[0].mxu0 %v121
  %v309 = vpop.f32.mrb[0].mxu0
  %v310 = vadd.f32 %v85, %v309
  %v311 = vpop.f32.mrb[0].mxu0
  %v312 = vadd.f32 %v89, %v311
  %313 = vmatprep.mubr.f32.mxu0 0.0
  %314 = vmatmul.mubr.f32.gmra.mrb[0].mxu0 %v124
  %v315 = vpop.f32.mrb[0].mxu0
  %v316 = vadd.f32 %v85, %v315
  %v317 = vpop.f32.mrb[0].mxu0
  %v318 = vadd.f32 %v89, %v317
  %319 = vmatprep.mubr.f32.mxu0 0.0
  %320 = vmatmul.mubr.f32.gmra.mrb[0].mxu0 %v127
  %v321 = vpop.f32.mrb[0].mxu0
  %v322 = vadd.f32 %v85, %v321
  %v323 = vpop.f32.mrb[0].mxu0
  %v324 = vadd.f32 %v89, %v323
  %325 = vmatprep.mubr.f32.mxu0 0.0
  %326 = vmatmul.mubr.f32.gmra.mrb[0].mxu0 %v130
  %v327 = vpop.f32.mrb[0].mxu0
  %v328 = vadd.f32 %v85, %v327
  %v329 = vpop.f32.mrb[0].mxu0
  %v330 = vadd.f32 %v89, %v329
  %331 = vmatprep.mubr.f32.mxu0 0.0
  %332 = vmatmul.mubr.f32.gmra.mrb[0].mxu0 %v133
  %v333 = vpop.f32.mrb[0].mxu0
  %v334 = vadd.f32 %v85, %v333
  %v335 = vpop.f32.mrb[0].mxu0
  %v336 = vadd.f32 %v89, %v335
  %337 = vmatprep.mubr.f32.mxu0 0.0
  %338 = vmatmul.mubr.f32.gmra.mrb[0].mxu0 %v136
  %v339 = vpop.f32.mrb[0].mxu0
  %v340 = vadd.f32 %v85, %v339
  %v341 = vpop.f32.mrb[0].mxu0
  %v342 = vadd.f32 %v89, %v341
  %343 = vmatprep.mubr.f32.mxu0 0.0
  %344 = vmatmul.mubr.f32.gmra.mrb[0].mxu0 %v139
  %v345 = vpop.f32.mrb[0].mxu0
  %v346 = vadd.f32 %v85, %v345
  %v347 = vpop.f32.mrb[0].mxu0
  %v348 = vadd.f32 %v89, %v347
  %349 = vmatprep.mubr.f32.mxu0 0.0
  %350 = vmatmul.mubr.f32.gmra.mrb[0].mxu0 %v142
  %v351 = vpop.f32.mrb[0].mxu0
  %v352 = vadd.f32 %v85, %v351
  %v353 = vpop.f32.mrb[0].mxu0
  %v354 = vadd.f32 %v89, %v353
  %355 = vmatprep.mubr.f32.mxu0 0.0
  %356 = vmatmul.mubr.f32.gmra.mrb[0].mxu0 %v145
  %v357 = vpop.f32.mrb[0].mxu0
  %v358 = vadd.f32 %v85, %v357
  %v359 = vpop.f32.mrb[0].mxu0
  %v360 = vadd.f32 %v89, %v359
  %361 = vmatprep.mubr.f32.mxu0 0.0
  %362 = vmatmul.mubr.f32.gmra.mrb[0].mxu0 %v148
  %v363 = vpop.f32.mrb[0].mxu0
  %v364 = vadd.f32 %v85, %v363
  %v365 = vpop.f32.mrb[0].mxu0
  %v366 = vadd.f32 %v89, %v365
  %367 = vmatprep.mubr.f32.mxu0 0.0
  %368 = vmatmul.mubr.f32.gmra.mrb[0].mxu0 %v151
  %v369 = vpop.f32.mrb[0].mxu0
  %v370 = vadd.f32 %v85, %v369
  %v371 = vpop.f32.mrb[0].mxu0
  %v372 = vadd.f32 %v89, %v371
  %373 = vmatprep.mubr.f32.mxu0 0.0
  %374 = vmatmul.mubr.f32.gmra.mrb[0].mxu0 %v154
  %v375 = vpop.f32.mrb[0].mxu0
  %v376 = vadd.f32 %v85, %v375
  %v377 = vpop.f32.mrb[0].mxu0
  %v378 = vadd.f32 %v89, %v377
  %379 = vmatprep.mubr.f32.mxu0 0.0
  %380 = vmatmul.mubr.f32.gmra.mrb[0].mxu0 %v157
  %v381 = vpop.f32.mrb[0].mxu0
  %v382 = vadd.f32 %v85, %v381
  %v383 = vpop.f32.mrb[0].mxu0
  %v384 = vadd.f32 %v89, %v383
  %385 = vmatprep.mubr.f32.mxu0 0.0
  %386 = vmatmul.mubr.f32.gmra.mrb[0].mxu0 %v160
  %v387 = vpop.f32.mrb[0].mxu0
  %v388 = vadd.f32 %v85, %v387
  %v389 = vpop.f32.mrb[0].mxu0
  %v390 = vadd.f32 %v89, %v389
  %391 = vmatprep.mubr.f32.mxu0 0.0
  %392 = vmatmul.mubr.f32.gmra.mrb[0].mxu0 %v163
  %v393 = vpop.f32.mrb[0].mxu0
  %v394 = vadd.f32 %v85, %v393
  %v395 = vpop.f32.mrb[0].mxu0
  %v396 = vadd.f32 %v89, %v395
  %397 = vmatprep.mubr.f32.mxu0 0.0
  %398 = vmatmul.mubr.f32.gmra.mrb[0].mxu0 %v166
  %v399 = vpop.f32.mrb[0].mxu0
  %v400 = vadd.f32 %v85, %v399
  %v401 = vpop.f32.mrb[0].mxu0
  %v402 = vadd.f32 %v89, %v401
  %403 = vmatprep.mubr.f32.mxu0 0.0
  %404 = vmatmul.mubr.f32.gmra.mrb[0].mxu0 %v169
  %v405 = vpop.f32.mrb[0].mxu0
  %v406 = vadd.f32 %v85, %v405
  %v407 = vpop.f32.mrb[0].mxu0
  %v408 = vadd.f32 %v89, %v407
  %409 = vmatprep.mubr.f32.mxu0 0.0
  %410 = vmatmul.mubr.f32.gmra.mrb[0].mxu0 %v172
  %v411 = vpop.f32.mrb[0].mxu0
  %v412 = vadd.f32 %v85, %v411
  %v413 = vpop.f32.mrb[0].mxu0
  %v414 = vadd.f32 %v89, %v413
  %415 = vmatprep.mubr.f32.mxu0 0.0
  %416 = vmatmul.mubr.f32.gmra.mrb[0].mxu0 %v175
  %v417 = vpop.f32.mrb[0].mxu0
  %v418 = vadd.f32 %v85, %v417
  %v419 = vpop.f32.mrb[0].mxu0
  %v420 = vadd.f32 %v89, %v419
  %421 = vmatprep.mubr.f32.mxu0 0.0
  %422 = vmatmul.mubr.f32.gmra.mrb[0].mxu0 %v178
  %v423 = vpop.f32.mrb[0].mxu0
  %v424 = vadd.f32 %v85, %v423
  %v425 = vpop.f32.mrb[0].mxu0
  %v426 = vadd.f32 %v89, %v425
  %427 = vmatprep.mubr.f32.mxu0 0.0
  %428 = vmatmul.mubr.f32.gmra.mrb[0].mxu0 %v181
  %v429 = vpop.f32.mrb[0].mxu0
  %v430 = vadd.f32 %v85, %v429
  %v431 = vpop.f32.mrb[0].mxu0
  %v432 = vadd.f32 %v89, %v431
  %433 = vmatprep.mubr.f32.mxu0 0.0
  %434 = vmatmul.mubr.f32.gmra.mrb[0].mxu0 %v184
  %v435 = vpop.f32.mrb[0].mxu0
  %v436 = vadd.f32 %v85, %v435
  %v437 = vpop.f32.mrb[0].mxu0
  %v438 = vadd.f32 %v89, %v437
  %439 = vmatprep.mubr.f32.mxu0 0.0
  %440 = vmatmul.mubr.f32.gmra.mrb[0].mxu0 %v187
  %v441 = vpop.f32.mrb[0].mxu0
  %v442 = vadd.f32 %v85, %v441
  %v443 = vpop.f32.mrb[0].mxu0
  %v444 = vadd.f32 %v89, %v443
  %445 = vdwg.mxu0
  %v446 = vtanh.pop %v256
  %v447 = vtanh.pop %v258
  %v448 = vtanh.pop %v262
  %v449 = vtanh.pop %v264
  %v450 = vtanh.pop %v268
  %v451 = vtanh.pop %v270
  %v452 = vtanh.pop %v274
  %v453 = vtanh.pop %v276
  %v454 = vtanh.pop %v280
  %v455 = vtanh.pop %v282
  %v456 = vtanh.pop %v286
  %v457 = vtanh.pop %v288
  %v458 = vtanh.pop %v292
  %v459 = vtanh.pop %v294
  %v460 = vtanh.pop %v298
  %v461 = vtanh.pop %v300
  %v462 = vtanh.pop %v304
  %v463 = vtanh.pop %v306
  %v464 = vtanh.pop %v310
  %v465 = vtanh.pop %v312
  %v466 = vtanh.pop %v316
  %v467 = vtanh.pop %v318
  %v468 = vtanh.pop %v322
  %v469 = vtanh.pop %v324
  %v470 = vtanh.pop %v328
  %v471 = vtanh.pop %v330
  %v472 = vtanh.pop %v334
  %v473 = vtanh.pop %v336
  %v474 = vtanh.pop %v340
  %v475 = vtanh.pop %v342
  %v476 = vtanh.pop %v346
  %v477 = vtanh.pop %v348
  %v478 = vtanh.pop %v352
  %v479 = vtanh.pop %v354
  %v480 = vtanh.pop %v358
  %v481 = vtanh.pop %v360
  %v482 = vtanh.pop %v364
  %v483 = vtanh.pop %v366
  %v484 = vtanh.pop %v370
  %v485 = vtanh.pop %v372
  %v486 = vtanh.pop %v376
  %v487 = vtanh.pop %v378
  %v488 = vtanh.pop %v382
  %v489 = vtanh.pop %v384
  %v490 = vtanh.pop %v388
  %v491 = vtanh.pop %v390
  %v492 = vtanh.pop %v394
  %v493 = vtanh.pop %v396
  %v494 = vtanh.pop %v400
  %v495 = vtanh.pop %v402
  %v496 = vtanh.pop %v406
  %v497 = vtanh.pop %v408
  %v498 = vtanh.pop %v412
  %v499 = vtanh.pop %v414
  %v500 = vtanh.pop %v418
  %v501 = vtanh.pop %v420
  %v502 = vtanh.pop %v424
  %v503 = vtanh.pop %v426
  %v504 = vtanh.pop %v430
  %v505 = vtanh.pop %v432
  %v506 = vtanh.pop %v436
  %v507 = vtanh.pop %v438
  %v508 = vtanh.pop %v442
  %v509 = vtanh.pop %v444
  %v510 = vld [vmem:[%s3] sm:$0xff]
  %v511 = vld [vmem:[%s3 + $0x8] sm:$0xff]
  %v512 = vld [vmem:[%s3 + $0x10] sm:$0xff]
  %v513 = vld [vmem:[%s3 + $0x18] sm:$0xff]
  %v514 = vld [vmem:[%s3 + $0x20] sm:$0xff]
  %v515 = vld [vmem:[%s3 + $0x28] sm:$0xff]
  %v516 = vld [vmem:[%s3 + $0x30] sm:$0xff]
  %v517 = vld [vmem:[%s3 + $0x38] sm:$0xff]
  %v518 = vld [vmem:[%s3 + $0x40] sm:$0xff]
  %v519 = vld [vmem:[%s3 + $0x48] sm:$0xff]
  %v520 = vld [vmem:[%s3 + $0x50] sm:$0xff]
  %v521 = vld [vmem:[%s3 + $0x58] sm:$0xff]
  %v522 = vld [vmem:[%s3 + $0x60] sm:$0xff]
  %v523 = vld [vmem:[%s3 + $0x68] sm:$0xff]
  %v524 = vld [vmem:[%s3 + $0x70] sm:$0xff]
  %v525 = vld [vmem:[%s3 + $0x78] sm:$0xff]
  %v526 = vld [vmem:[%s3 + $0x80] sm:$0xff]
  %v527 = vld [vmem:[%s3 + $0x88] sm:$0xff]
  %v528 = vld [vmem:[%s3 + $0x90] sm:$0xff]
  %v529 = vld [vmem:[%s3 + $0x98] sm:$0xff]
  %v530 = vld [vmem:[%s3 + $0xa0] sm:$0xff]
  %v531 = vld [vmem:[%s3 + $0xa8] sm:$0xff]
  %v532 = vld [vmem:[%s3 + $0xb0] sm:$0xff]
  %v533 = vld [vmem:[%s3 + $0xb8] sm:$0xff]
  %v534 = vld [vmem:[%s3 + $0xc0] sm:$0xff]
  %v535 = vld [vmem:[%s3 + $0xc8] sm:$0xff]
  %v536 = vld [vmem:[%s3 + $0xd0] sm:$0xff]
  %v537 = vld [vmem:[%s3 + $0xd8] sm:$0xff]
  %v538 = vld [vmem:[%s3 + $0xe0] sm:$0xff]
  %v539 = vld [vmem:[%s3 + $0xe8] sm:$0xff]
  %v540 = vld [vmem:[%s3 + $0xf0] sm:$0xff]
  %v541 = vld [vmem:[%s3 + $0xf8] sm:$0xff]
  %v542 = vld [vmem:[%s4] sm:$0x1]
  %v544 = vlaneseq
  %v545 = vshrl.u32 %v544, 7
  %v546 = vsub.s32 0, %v545
  %v547 = vrot.slane %v542, %v546
  %549 = vmatprep.subr.mxu0 0.0
  %550 = vmatpush1.msra.mxu0 %v510
  %551 = vmatprep.subr.mxu0 0.0
  %552 = vmatpush1.msra.mxu0 %v511
  %553 = vmatprep.subr.mxu0 0.0
  %554 = vmatpush1.msra.mxu0 %v512
  %555 = vmatprep.subr.mxu0 0.0
  %556 = vmatpush1.msra.mxu0 %v513
  %557 = vmatprep.subr.mxu0 0.0
  %558 = vmatpush1.msra.mxu0 %v514
  %559 = vmatprep.subr.mxu0 0.0
  %560 = vmatpush1.msra.mxu0 %v515
  %561 = vmatprep.subr.mxu0 0.0
  %562 = vmatpush1.msra.mxu0 %v516
  %563 = vmatprep.subr.mxu0 0.0
  %564 = vmatpush1.msra.mxu0 %v517
  %565 = vmatprep.subr.mxu0 0.0
  %566 = vmatpush1.msra.mxu0 %v518
  %567 = vmatprep.subr.mxu0 0.0
  %568 = vmatpush1.msra.mxu0 %v519
  %569 = vmatprep.subr.mxu0 0.0
  %570 = vmatpush1.msra.mxu0 %v520
  %571 = vmatprep.subr.mxu0 0.0
  %572 = vmatpush1.msra.mxu0 %v521
  %573 = vmatprep.subr.mxu0 0.0
  %574 = vmatpush1.msra.mxu0 %v522
  %575 = vmatprep.subr.mxu0 0.0
  %576 = vmatpush1.msra.mxu0 %v523
  %577 = vmatprep.subr.mxu0 0.0
  %578 = vmatpush1.msra.mxu0 %v524
  %579 = vmatprep.subr.mxu0 0.0
  %580 = vmatpush1.msra.mxu0 %v525
  %581 = vmatprep.subr.mxu0 0.0
  %582 = vmatpush1.msra.mxu0 %v526
  %583 = vmatprep.subr.mxu0 0.0
  %584 = vmatpush1.msra.mxu0 %v527
  %585 = vmatprep.subr.mxu0 0.0
  %586 = vmatpush1.msra.mxu0 %v528
  %587 = vmatprep.subr.mxu0 0.0
  %588 = vmatpush1.msra.mxu0 %v529
  %589 = vmatprep.subr.mxu0 0.0
  %590 = vmatpush1.msra.mxu0 %v530
  %591 = vmatprep.subr.mxu0 0.0
  %592 = vmatpush1.msra.mxu0 %v531
  %593 = vmatprep.subr.mxu0 0.0
  %594 = vmatpush1.msra.mxu0 %v532
  %595 = vmatprep.subr.mxu0 0.0
  %596 = vmatpush1.msra.mxu0 %v533
  %597 = vmatprep.subr.mxu0 0.0
  %598 = vmatpush1.msra.mxu0 %v534
  %599 = vmatprep.subr.mxu0 0.0
  %600 = vmatpush1.msra.mxu0 %v535
  %601 = vmatprep.subr.mxu0 0.0
  %602 = vmatpush1.msra.mxu0 %v536
  %603 = vmatprep.subr.mxu0 0.0
  %604 = vmatpush1.msra.mxu0 %v537
  %605 = vmatprep.subr.mxu0 0.0
  %606 = vmatpush1.msra.mxu0 %v538
  %607 = vmatprep.subr.mxu0 0.0
  %608 = vmatpush1.msra.mxu0 %v539
  %609 = vmatprep.subr.mxu0 0.0
  %610 = vmatpush1.msra.mxu0 %v540
  %611 = vmatprep.subr.mxu0 0.0
  %612 = vmatpush1.msra.mxu0 %v541
  %613 = vmatprep.mubr.f32.mxu0 %v447
  %614 = vmatmul.mubr.f32.gmra.mrb[0].mxu0 %v446
  %v615 = vpop.f32.mrb[0].mxu0
  %v616 = vadd.f32 %v547, %v615
  %v617 = vpop.f32.mrb[0].mxu0
  %618 = vmatprep.mubr.f32.mxu0 %v449
  %619 = vmatmul.mubr.f32.gmra.mrb[0].mxu0 %v448
  %v620 = vpop.f32.mrb[0].mxu0
  %v621 = vadd.f32 %v547, %v620
  %v622 = vpop.f32.mrb[0].mxu0
  %623 = vmatprep.mubr.f32.mxu0 %v451
  %624 = vmatmul.mubr.f32.gmra.mrb[0].mxu0 %v450
  %v625 = vpop.f32.mrb[0].mxu0
  %v626 = vadd.f32 %v547, %v625
  %v627 = vpop.f32.mrb[0].mxu0
  %628 = vmatprep.mubr.f32.mxu0 %v453
  %629 = vmatmul.mubr.f32.gmra.mrb[0].mxu0 %v452
  %v630 = vpop.f32.mrb[0].mxu0
  %v631 = vadd.f32 %v547, %v630
  %v632 = vpop.f32.mrb[0].mxu0
  %633 = vmatprep.mubr.f32.mxu0 %v455
  %634 = vmatmul.mubr.f32.gmra.mrb[0].mxu0 %v454
  %v635 = vpop.f32.mrb[0].mxu0
  %v636 = vadd.f32 %v547, %v635
  %v637 = vpop.f32.mrb[0].mxu0
  %638 = vmatprep.mubr.f32.mxu0 %v457
  %639 = vmatmul.mubr.f32.gmra.mrb[0].mxu0 %v456
  %v640 = vpop.f32.mrb[0].mxu0
  %v641 = vadd.f32 %v547, %v640
  %v642 = vpop.f32.mrb[0].mxu0
  %643 = vmatprep.mubr.f32.mxu0 %v459
  %644 = vmatmul.mubr.f32.gmra.mrb[0].mxu0 %v458
  %v645 = vpop.f32.mrb[0].mxu0
  %v646 = vadd.f32 %v547, %v645
  %v647 = vpop.f32.mrb[0].mxu0
  %648 = vmatprep.mubr.f32.mxu0 %v461
  %649 = vmatmul.mubr.f32.gmra.mrb[0].mxu0 %v460
  %v650 = vpop.f32.mrb[0].mxu0
  %v651 = vadd.f32 %v547, %v650
  %v652 = vpop.f32.mrb[0].mxu0
  %653 = vmatprep.mubr.f32.mxu0 %v463
  %654 = vmatmul.mubr.f32.gmra.mrb[0].mxu0 %v462
  %v655 = vpop.f32.mrb[0].mxu0
  %v656 = vadd.f32 %v547, %v655
  %v657 = vpop.f32.mrb[0].mxu0
  %658 = vmatprep.mubr.f32.mxu0 %v465
  %659 = vmatmul.mubr.f32.gmra.mrb[0].mxu0 %v464
  %v660 = vpop.f32.mrb[0].mxu0
  %v661 = vadd.f32 %v547, %v660
  %v662 = vpop.f32.mrb[0].mxu0
  %663 = vmatprep.mubr.f32.mxu0 %v467
  %664 = vmatmul.mubr.f32.gmra.mrb[0].mxu0 %v466
  %v665 = vpop.f32.mrb[0].mxu0
  %v666 = vadd.f32 %v547, %v665
  %v667 = vpop.f32.mrb[0].mxu0
  %668 = vmatprep.mubr.f32.mxu0 %v469
  %669 = vmatmul.mubr.f32.gmra.mrb[0].mxu0 %v468
  %v670 = vpop.f32.mrb[0].mxu0
  %v671 = vadd.f32 %v547, %v670
  %v672 = vpop.f32.mrb[0].mxu0
  %673 = vmatprep.mubr.f32.mxu0 %v471
  %674 = vmatmul.mubr.f32.gmra.mrb[0].mxu0 %v470
  %v675 = vpop.f32.mrb[0].mxu0
  %v676 = vadd.f32 %v547, %v675
  %v677 = vpop.f32.mrb[0].mxu0
  %678 = vmatprep.mubr.f32.mxu0 %v473
  %679 = vmatmul.mubr.f32.gmra.mrb[0].mxu0 %v472
  %v680 = vpop.f32.mrb[0].mxu0
  %v681 = vadd.f32 %v547, %v680
  %v682 = vpop.f32.mrb[0].mxu0
  %683 = vmatprep.mubr.f32.mxu0 %v475
  %684 = vmatmul.mubr.f32.gmra.mrb[0].mxu0 %v474
  %v685 = vpop.f32.mrb[0].mxu0
  %v686 = vadd.f32 %v547, %v685
  %v687 = vpop.f32.mrb[0].mxu0
  %688 = vmatprep.mubr.f32.mxu0 %v477
  %689 = vmatmul.mubr.f32.gmra.mrb[0].mxu0 %v476
  %v690 = vpop.f32.mrb[0].mxu0
  %v691 = vadd.f32 %v547, %v690
  %v692 = vpop.f32.mrb[0].mxu0
  %693 = vmatprep.mubr.f32.mxu0 %v479
  %694 = vmatmul.mubr.f32.gmra.mrb[0].mxu0 %v478
  %v695 = vpop.f32.mrb[0].mxu0
  %v696 = vadd.f32 %v547, %v695
  %v697 = vpop.f32.mrb[0].mxu0
  %698 = vmatprep.mubr.f32.mxu0 %v481
  %699 = vmatmul.mubr.f32.gmra.mrb[0].mxu0 %v480
  %v700 = vpop.f32.mrb[0].mxu0
  %v701 = vadd.f32 %v547, %v700
  %v702 = vpop.f32.mrb[0].mxu0
  %703 = vmatprep.mubr.f32.mxu0 %v483
  %704 = vmatmul.mubr.f32.gmra.mrb[0].mxu0 %v482
  %v705 = vpop.f32.mrb[0].mxu0
  %v706 = vadd.f32 %v547, %v705
  %v707 = vpop.f32.mrb[0].mxu0
  %708 = vmatprep.mubr.f32.mxu0 %v485
  %709 = vmatmul.mubr.f32.gmra.mrb[0].mxu0 %v484
  %v710 = vpop.f32.mrb[0].mxu0
  %v711 = vadd.f32 %v547, %v710
  %v712 = vpop.f32.mrb[0].mxu0
  %713 = vmatprep.mubr.f32.mxu0 %v487
  %714 = vmatmul.mubr.f32.gmra.mrb[0].mxu0 %v486
  %v715 = vpop.f32.mrb[0].mxu0
  %v716 = vadd.f32 %v547, %v715
  %v717 = vpop.f32.mrb[0].mxu0
  %718 = vmatprep.mubr.f32.mxu0 %v489
  %719 = vmatmul.mubr.f32.gmra.mrb[0].mxu0 %v488
  %v720 = vpop.f32.mrb[0].mxu0
  %v721 = vadd.f32 %v547, %v720
  %v722 = vpop.f32.mrb[0].mxu0
  %723 = vmatprep.mubr.f32.mxu0 %v491
  %724 = vmatmul.mubr.f32.gmra.mrb[0].mxu0 %v490
  %v725 = vpop.f32.mrb[0].mxu0
  %v726 = vadd.f32 %v547, %v725
  %v727 = vpop.f32.mrb[0].mxu0
  %728 = vmatprep.mubr.f32.mxu0 %v493
  %729 = vmatmul.mubr.f32.gmra.mrb[0].mxu0 %v492
  %v730 = vpop.f32.mrb[0].mxu0
  %v731 = vadd.f32 %v547, %v730
  %v732 = vpop.f32.mrb[0].mxu0
  %733 = vmatprep.mubr.f32.mxu0 %v495
  %734 = vmatmul.mubr.f32.gmra.mrb[0].mxu0 %v494
  %v735 = vpop.f32.mrb[0].mxu0
  %v736 = vadd.f32 %v547, %v735
  %v737 = vpop.f32.mrb[0].mxu0
  %738 = vmatprep.mubr.f32.mxu0 %v497
  %739 = vmatmul.mubr.f32.gmra.mrb[0].mxu0 %v496
  %v740 = vpop.f32.mrb[0].mxu0
  %v741 = vadd.f32 %v547, %v740
  %v742 = vpop.f32.mrb[0].mxu0
  %743 = vmatprep.mubr.f32.mxu0 %v499
  %744 = vmatmul.mubr.f32.gmra.mrb[0].mxu0 %v498
  %v745 = vpop.f32.mrb[0].mxu0
  %v746 = vadd.f32 %v547, %v745
  %v747 = vpop.f32.mrb[0].mxu0
  %748 = vmatprep.mubr.f32.mxu0 %v501
  %749 = vmatmul.mubr.f32.gmra.mrb[0].mxu0 %v500
  %v750 = vpop.f32.mrb[0].mxu0
  %v751 = vadd.f32 %v547, %v750
  %v752 = vpop.f32.mrb[0].mxu0
  %753 = vmatprep.mubr.f32.mxu0 %v503
  %754 = vmatmul.mubr.f32.gmra.mrb[0].mxu0 %v502
  %v755 = vpop.f32.mrb[0].mxu0
  %v756 = vadd.f32 %v547, %v755
  %v757 = vpop.f32.mrb[0].mxu0
  %758 = vmatprep.mubr.f32.mxu0 %v505
  %759 = vmatmul.mubr.f32.gmra.mrb[0].mxu0 %v504
  %v760 = vpop.f32.mrb[0].mxu0
  %v761 = vadd.f32 %v547, %v760
  %v762 = vpop.f32.mrb[0].mxu0
  %763 = vmatprep.mubr.f32.mxu0 %v507
  %764 = vmatmul.mubr.f32.gmra.mrb[0].mxu0 %v506
  %v765 = vpop.f32.mrb[0].mxu0
  %v766 = vadd.f32 %v547, %v765
  %v767 = vpop.f32.mrb[0].mxu0
  %768 = vmatprep.mubr.f32.mxu0 %v509
  %769 = vmatmul.mubr.f32.gmra.mrb[0].mxu0 %v508
  %v770 = vpop.f32.mrb[0].mxu0
  %v771 = vadd.f32 %v547, %v770
  %v772 = vpop.f32.mrb[0].mxu0
  %773 = vdwg.mxu0
  %v774 = vtanh.pop %v616
  %v775 = vtanh.pop %v621
  %v776 = vtanh.pop %v626
  %v777 = vtanh.pop %v631
  %v778 = vtanh.pop %v636
  %v779 = vtanh.pop %v641
  %v780 = vtanh.pop %v646
  %v781 = vtanh.pop %v651
  %v782 = vtanh.pop %v656
  %v783 = vtanh.pop %v661
  %v784 = vtanh.pop %v666
  %v785 = vtanh.pop %v671
  %v786 = vtanh.pop %v676
  %v787 = vtanh.pop %v681
  %v788 = vtanh.pop %v686
  %v789 = vtanh.pop %v691
  %v790 = vtanh.pop %v696
  %v791 = vtanh.pop %v701
  %v792 = vtanh.pop %v706
  %v793 = vtanh.pop %v711
  %v794 = vtanh.pop %v716
  %v795 = vtanh.pop %v721
  %v796 = vtanh.pop %v726
  %v797 = vtanh.pop %v731
  %v798 = vtanh.pop %v736
  %v799 = vtanh.pop %v741
  %v800 = vtanh.pop %v746
  %v801 = vtanh.pop %v751
  %v802 = vtanh.pop %v756
  %v803 = vtanh.pop %v761
  %v804 = vtanh.pop %v766
  %v805 = vtanh.pop %v771
  %v806 = vld [vmem:[%s5] sm:$0xff]
  %v807 = vld [vmem:[%s5 + $0x8] sm:$0xff]
  %v808 = vld [vmem:[%s5 + $0x10] sm:$0xff]
  %v809 = vld [vmem:[%s5 + $0x18] sm:$0xff]
  %v810 = vld [vmem:[%s5 + $0x20] sm:$0xff]
  %v811 = vld [vmem:[%s5 + $0x28] sm:$0xff]
  %v812 = vld [vmem:[%s5 + $0x30] sm:$0xff]
  %v813 = vld [vmem:[%s5 + $0x38] sm:$0xff]
  %v814 = vld [vmem:[%s5 + $0x40] sm:$0xff]
  %v815 = vld [vmem:[%s5 + $0x48] sm:$0xff]
  %v816 = vld [vmem:[%s5 + $0x50] sm:$0xff]
  %v817 = vld [vmem:[%s5 + $0x58] sm:$0xff]
  %v818 = vld [vmem:[%s5 + $0x60] sm:$0xff]
  %v819 = vld [vmem:[%s5 + $0x68] sm:$0xff]
  %v820 = vld [vmem:[%s5 + $0x70] sm:$0xff]
  %v821 = vld [vmem:[%s5 + $0x78] sm:$0xff]
  %v822 = vld [vmem:[%s6] sm:$0x1]
  %v824 = vlaneseq
  %v825 = vshrl.u32 %v824, 7
  %v826 = vsub.s32 0, %v825
  %v827 = vrot.slane %v822, %v826
  %829 = vmatprep.subr.mxu0 0.0
  %830 = vmatpush1.msra.mxu0 %v806
  %831 = vmatprep.subr.mxu0 0.0
  %832 = vmatpush1.msra.mxu0 %v807
  %833 = vmatprep.subr.mxu0 0.0
  %834 = vmatpush1.msra.mxu0 %v808
  %835 = vmatprep.subr.mxu0 0.0
  %836 = vmatpush1.msra.mxu0 %v809
  %837 = vmatprep.subr.mxu0 0.0
  %838 = vmatpush1.msra.mxu0 %v810
  %839 = vmatprep.subr.mxu0 0.0
  %840 = vmatpush1.msra.mxu0 %v811
  %841 = vmatprep.subr.mxu0 0.0
  %842 = vmatpush1.msra.mxu0 %v812
  %843 = vmatprep.subr.mxu0 0.0
  %844 = vmatpush1.msra.mxu0 %v813
  %845 = vmatprep.subr.mxu0 0.0
  %846 = vmatpush1.msra.mxu0 %v814
  %847 = vmatprep.subr.mxu0 0.0
  %848 = vmatpush1.msra.mxu0 %v815
  %849 = vmatprep.subr.mxu0 0.0
  %850 = vmatpush1.msra.mxu0 %v816
  %851 = vmatprep.subr.mxu0 0.0
  %852 = vmatpush1.msra.mxu0 %v817
  %853 = vmatprep.subr.mxu0 0.0
  %854 = vmatpush1.msra.mxu0 %v818
  %855 = vmatprep.subr.mxu0 0.0
  %856 = vmatpush1.msra.mxu0 %v819
  %857 = vmatprep.subr.mxu0 0.0
  %858 = vmatpush1.msra.mxu0 %v820
  %859 = vmatprep.subr.mxu0 0.0
  %860 = vmatpush1.msra.mxu0 %v821
  %861 = vmatprep.subr.mxu0 0.0
  %862 = vmatpush1.msra.mxu0 0.0
  %863 = vmatprep.subr.mxu0 0.0
  %864 = vmatpush1.msra.mxu0 0.0
  %865 = vmatprep.subr.mxu0 0.0
  %866 = vmatpush1.msra.mxu0 0.0
  %867 = vmatprep.subr.mxu0 0.0
  %868 = vmatpush1.msra.mxu0 0.0
  %869 = vmatprep.subr.mxu0 0.0
  %870 = vmatpush1.msra.mxu0 0.0
  %871 = vmatprep.subr.mxu0 0.0
  %872 = vmatpush1.msra.mxu0 0.0
  %873 = vmatprep.subr.mxu0 0.0
  %874 = vmatpush1.msra.mxu0 0.0
  %875 = vmatprep.subr.mxu0 0.0
  %876 = vmatpush1.msra.mxu0 0.0
  %877 = vmatprep.subr.mxu0 0.0
  %878 = vmatpush1.msra.mxu0 0.0
  %879 = vmatprep.subr.mxu0 0.0
  %880 = vmatpush1.msra.mxu0 0.0
  %881 = vmatprep.subr.mxu0 0.0
  %882 = vmatpush1.msra.mxu0 0.0
  %883 = vmatprep.subr.mxu0 0.0
  %884 = vmatpush1.msra.mxu0 0.0
  %885 = vmatprep.subr.mxu0 0.0
  %886 = vmatpush1.msra.mxu0 0.0
  %887 = vmatprep.subr.mxu0 0.0
  %888 = vmatpush1.msra.mxu0 0.0
  %889 = vmatprep.subr.mxu0 0.0
  %890 = vmatpush1.msra.mxu0 0.0
  %891 = vmatprep.subr.mxu0 0.0
  %892 = vmatpush1.msra.mxu0 0.0
  %893 = vmatprep.mubr.f32.mxu0 0.0
  %894 = vmatmul.mubr.f32.gmra.mrb[0].mxu0 %v774
  %v895 = vpop.f32.mrb[0].mxu0
  %v896 = vadd.f32 %v827, %v895
  %v897 = vpop.f32.mrb[0].mxu0
  %898 = vmatprep.mubr.f32.mxu0 0.0
  %899 = vmatmul.mubr.f32.gmra.mrb[0].mxu0 %v775
  %v900 = vpop.f32.mrb[0].mxu0
  %v901 = vadd.f32 %v827, %v900
  %v902 = vpop.f32.mrb[0].mxu0
  %903 = vmatprep.mubr.f32.mxu0 0.0
  %904 = vmatmul.mubr.f32.gmra.mrb[0].mxu0 %v776
  %v905 = vpop.f32.mrb[0].mxu0
  %v906 = vadd.f32 %v827, %v905
  %v907 = vpop.f32.mrb[0].mxu0
  %908 = vmatprep.mubr.f32.mxu0 0.0
  %909 = vmatmul.mubr.f32.gmra.mrb[0].mxu0 %v777
  %v910 = vpop.f32.mrb[0].mxu0
  %v911 = vadd.f32 %v827, %v910
  %v912 = vpop.f32.mrb[0].mxu0
  %913 = vmatprep.mubr.f32.mxu0 0.0
  %914 = vmatmul.mubr.f32.gmra.mrb[0].mxu0 %v778
  %v915 = vpop.f32.mrb[0].mxu0
  %v916 = vadd.f32 %v827, %v915
  %v917 = vpop.f32.mrb[0].mxu0
  %918 = vmatprep.mubr.f32.mxu0 0.0
  %919 = vmatmul.mubr.f32.gmra.mrb[0].mxu0 %v779
  %v920 = vpop.f32.mrb[0].mxu0
  %v921 = vadd.f32 %v827, %v920
  %v922 = vpop.f32.mrb[0].mxu0
  %923 = vmatprep.mubr.f32.mxu0 0.0
  %924 = vmatmul.mubr.f32.gmra.mrb[0].mxu0 %v780
  %v925 = vpop.f32.mrb[0].mxu0
  %v926 = vadd.f32 %v827, %v925
  %v927 = vpop.f32.mrb[0].mxu0
  %928 = vmatprep.mubr.f32.mxu0 0.0
  %929 = vmatmul.mubr.f32.gmra.mrb[0].mxu0 %v781
  %v930 = vpop.f32.mrb[0].mxu0
  %v931 = vadd.f32 %v827, %v930
  %v932 = vpop.f32.mrb[0].mxu0
  %933 = vmatprep.mubr.f32.mxu0 0.0
  %934 = vmatmul.mubr.f32.gmra.mrb[0].mxu0 %v782
  %v935 = vpop.f32.mrb[0].mxu0
  %v936 = vadd.f32 %v827, %v935
  %v937 = vpop.f32.mrb[0].mxu0
  %938 = vmatprep.mubr.f32.mxu0 0.0
  %939 = vmatmul.mubr.f32.gmra.mrb[0].mxu0 %v783
  %v940 = vpop.f32.mrb[0].mxu0
  %v941 = vadd.f32 %v827, %v940
  %v942 = vpop.f32.mrb[0].mxu0
  %943 = vmatprep.mubr.f32.mxu0 0.0
  %944 = vmatmul.mubr.f32.gmra.mrb[0].mxu0 %v784
  %v945 = vpop.f32.mrb[0].mxu0
  %v946 = vadd.f32 %v827, %v945
  %v947 = vpop.f32.mrb[0].mxu0
  %948 = vmatprep.mubr.f32.mxu0 0.0
  %949 = vmatmul.mubr.f32.gmra.mrb[0].mxu0 %v785
  %v950 = vpop.f32.mrb[0].mxu0
  %v951 = vadd.f32 %v827, %v950
  %v952 = vpop.f32.mrb[0].mxu0
  %953 = vmatprep.mubr.f32.mxu0 0.0
  %954 = vmatmul.mubr.f32.gmra.mrb[0].mxu0 %v786
  %v955 = vpop.f32.mrb[0].mxu0
  %v956 = vadd.f32 %v827, %v955
  %v957 = vpop.f32.mrb[0].mxu0
  %958 = vmatprep.mubr.f32.mxu0 0.0
  %959 = vmatmul.mubr.f32.gmra.mrb[0].mxu0 %v787
  %v960 = vpop.f32.mrb[0].mxu0
  %v961 = vadd.f32 %v827, %v960
  %v962 = vpop.f32.mrb[0].mxu0
  %963 = vmatprep.mubr.f32.mxu0 0.0
  %964 = vmatmul.mubr.f32.gmra.mrb[0].mxu0 %v788
  %v965 = vpop.f32.mrb[0].mxu0
  %v966 = vadd.f32 %v827, %v965
  %v967 = vpop.f32.mrb[0].mxu0
  %968 = vmatprep.mubr.f32.mxu0 0.0
  %969 = vmatmul.mubr.f32.gmra.mrb[0].mxu0 %v789
  %v970 = vpop.f32.mrb[0].mxu0
  %v971 = vadd.f32 %v827, %v970
  %v972 = vpop.f32.mrb[0].mxu0
  %973 = vmatprep.mubr.f32.mxu0 0.0
  %974 = vmatmul.mubr.f32.gmra.mrb[0].mxu0 %v790
  %v975 = vpop.f32.mrb[0].mxu0
  %v976 = vadd.f32 %v827, %v975
  %v977 = vpop.f32.mrb[0].mxu0
  %978 = vmatprep.mubr.f32.mxu0 0.0
  %979 = vmatmul.mubr.f32.gmra.mrb[0].mxu0 %v791
  %v980 = vpop.f32.mrb[0].mxu0
  %v981 = vadd.f32 %v827, %v980
  %v982 = vpop.f32.mrb[0].mxu0
  %983 = vmatprep.mubr.f32.mxu0 0.0
  %984 = vmatmul.mubr.f32.gmra.mrb[0].mxu0 %v792
  %v985 = vpop.f32.mrb[0].mxu0
  %v986 = vadd.f32 %v827, %v985
  %v987 = vpop.f32.mrb[0].mxu0
  %988 = vmatprep.mubr.f32.mxu0 0.0
  %989 = vmatmul.mubr.f32.gmra.mrb[0].mxu0 %v793
  %v990 = vpop.f32.mrb[0].mxu0
  %v991 = vadd.f32 %v827, %v990
  %v992 = vpop.f32.mrb[0].mxu0
  %993 = vmatprep.mubr.f32.mxu0 0.0
  %994 = vmatmul.mubr.f32.gmra.mrb[0].mxu0 %v794
  %v995 = vpop.f32.mrb[0].mxu0
  %v996 = vadd.f32 %v827, %v995
  %v997 = vpop.f32.mrb[0].mxu0
  %998 = vmatprep.mubr.f32.mxu0 0.0
  %999 = vmatmul.mubr.f32.gmra.mrb[0].mxu0 %v795
  %v1000 = vpop.f32.mrb[0].mxu0
  %v1001 = vadd.f32 %v827, %v1000
  %v1002 = vpop.f32.mrb[0].mxu0
  %1003 = vmatprep.mubr.f32.mxu0 0.0
  %1004 = vmatmul.mubr.f32.gmra.mrb[0].mxu0 %v796
  %v1005 = vpop.f32.mrb[0].mxu0
  %v1006 = vadd.f32 %v827, %v1005
  %v1007 = vpop.f32.mrb[0].mxu0
  %1008 = vmatprep.mubr.f32.mxu0 0.0
  %1009 = vmatmul.mubr.f32.gmra.mrb[0].mxu0 %v797
  %v1010 = vpop.f32.mrb[0].mxu0
  %v1011 = vadd.f32 %v827, %v1010
  %v1012 = vpop.f32.mrb[0].mxu0
  %1013 = vmatprep.mubr.f32.mxu0 0.0
  %1014 = vmatmul.mubr.f32.gmra.mrb[0].mxu0 %v798
  %v1015 = vpop.f32.mrb[0].mxu0
  %v1016 = vadd.f32 %v827, %v1015
  %v1017 = vpop.f32.mrb[0].mxu0
  %1018 = vmatprep.mubr.f32.mxu0 0.0
  %1019 = vmatmul.mubr.f32.gmra.mrb[0].mxu0 %v799
  %v1020 = vpop.f32.mrb[0].mxu0
  %v1021 = vadd.f32 %v827, %v1020
  %v1022 = vpop.f32.mrb[0].mxu0
  %1023 = vmatprep.mubr.f32.mxu0 0.0
  %1024 = vmatmul.mubr.f32.gmra.mrb[0].mxu0 %v800
  %v1025 = vpop.f32.mrb[0].mxu0
  %v1026 = vadd.f32 %v827, %v1025
  %v1027 = vpop.f32.mrb[0].mxu0
  %1028 = vmatprep.mubr.f32.mxu0 0.0
  %1029 = vmatmul.mubr.f32.gmra.mrb[0].mxu0 %v801
  %v1030 = vpop.f32.mrb[0].mxu0
  %v1031 = vadd.f32 %v827, %v1030
  %v1032 = vpop.f32.mrb[0].mxu0
  %1033 = vmatprep.mubr.f32.mxu0 0.0
  %1034 = vmatmul.mubr.f32.gmra.mrb[0].mxu0 %v802
  %v1035 = vpop.f32.mrb[0].mxu0
  %v1036 = vadd.f32 %v827, %v1035
  %v1037 = vpop.f32.mrb[0].mxu0
  %1038 = vmatprep.mubr.f32.mxu0 0.0
  %1039 = vmatmul.mubr.f32.gmra.mrb[0].mxu0 %v803
  %v1040 = vpop.f32.mrb[0].mxu0
  %v1041 = vadd.f32 %v827, %v1040
  %v1042 = vpop.f32.mrb[0].mxu0
  %1043 = vmatprep.mubr.f32.mxu0 0.0
  %1044 = vmatmul.mubr.f32.gmra.mrb[0].mxu0 %v804
  %v1045 = vpop.f32.mrb[0].mxu0
  %v1046 = vadd.f32 %v827, %v1045
  %v1047 = vpop.f32.mrb[0].mxu0
  %1048 = vmatprep.mubr.f32.mxu0 0.0
  %1049 = vmatmul.mubr.f32.gmra.mrb[0].mxu0 %v805
  %v1050 = vpop.f32.mrb[0].mxu0
  %v1051 = vadd.f32 %v827, %v1050
  %v1052 = vpop.f32.mrb[0].mxu0
  %1053 = vdwg.mxu0
  %v1054 = vtanh.pop %v896
  %v1055 = vtanh.pop %v901
  %v1056 = vtanh.pop %v906
  %v1057 = vtanh.pop %v911
  %v1058 = vtanh.pop %v916
  %v1059 = vtanh.pop %v921
  %v1060 = vtanh.pop %v926
  %v1061 = vtanh.pop %v931
  %v1062 = vtanh.pop %v936
  %v1063 = vtanh.pop %v941
  %v1064 = vtanh.pop %v946
  %v1065 = vtanh.pop %v951
  %v1066 = vtanh.pop %v956
  %v1067 = vtanh.pop %v961
  %v1068 = vtanh.pop %v966
  %v1069 = vtanh.pop %v971
  %v1070 = vtanh.pop %v976
  %v1071 = vtanh.pop %v981
  %v1072 = vtanh.pop %v986
  %v1073 = vtanh.pop %v991
  %v1074 = vtanh.pop %v996
  %v1075 = vtanh.pop %v1001
  %v1076 = vtanh.pop %v1006
  %v1077 = vtanh.pop %v1011
  %v1078 = vtanh.pop %v1016
  %v1079 = vtanh.pop %v1021
  %v1080 = vtanh.pop %v1026
  %v1081 = vtanh.pop %v1031
  %v1082 = vtanh.pop %v1036
  %v1083 = vtanh.pop %v1041
  %v1084 = vtanh.pop %v1046
  %v1085 = vtanh.pop %v1051
  %v1086 = vld [vmem:[%s7] sm:$0xff]
  %v1087 = vld [vmem:[%s7 + $0x8] sm:$0xff]
  %v1088 = vld [vmem:[%s7 + $0x10] sm:$0xff]
  %v1089 = vld [vmem:[%s7 + $0x18] sm:$0xff]
  %v1090 = vld [vmem:[%s7 + $0x20] sm:$0xff]
  %v1091 = vld [vmem:[%s7 + $0x28] sm:$0xff]
  %v1092 = vld [vmem:[%s7 + $0x30] sm:$0xff]
  %v1093 = vld [vmem:[%s7 + $0x38] sm:$0xff]
  %v1094 = vld [vmem:[%s8] sm:$0x1]
  %v1096 = vlaneseq
  %v1097 = vshrl.u32 %v1096, 7
  %v1098 = vsub.s32 0, %v1097
  %v1099 = vrot.slane %v1094, %v1098
  %v1102 = vsel %vm92, %v1054, 0
  %v1105 = vsel %vm92, %v1055, 0
  %v1108 = vsel %vm92, %v1056, 0
  %v1111 = vsel %vm92, %v1057, 0
  %v1114 = vsel %vm92, %v1058, 0
  %v1117 = vsel %vm92, %v1059, 0
  %v1120 = vsel %vm92, %v1060, 0
  %v1123 = vsel %vm92, %v1061, 0
  %v1126 = vsel %vm92, %v1062, 0
  %v1129 = vsel %vm92, %v1063, 0
  %v1132 = vsel %vm92, %v1064, 0
  %v1135 = vsel %vm92, %v1065, 0
  %v1138 = vsel %vm92, %v1066, 0
  %v1141 = vsel %vm92, %v1067, 0
  %v1144 = vsel %vm92, %v1068, 0
  %v1147 = vsel %vm92, %v1069, 0
  %v1150 = vsel %vm92, %v1070, 0
  %v1153 = vsel %vm92, %v1071, 0
  %v1156 = vsel %vm92, %v1072, 0
  %v1159 = vsel %vm92, %v1073, 0
  %v1162 = vsel %vm92, %v1074, 0
  %v1165 = vsel %vm92, %v1075, 0
  %v1168 = vsel %vm92, %v1076, 0
  %v1171 = vsel %vm92, %v1077, 0
  %v1174 = vsel %vm92, %v1078, 0
  %v1177 = vsel %vm92, %v1079, 0
  %v1180 = vsel %vm92, %v1080, 0
  %v1183 = vsel %vm92, %v1081, 0
  %v1186 = vsel %vm92, %v1082, 0
  %v1189 = vsel %vm92, %v1083, 0
  %v1192 = vsel %vm92, %v1084, 0
  %v1195 = vsel %vm92, %v1085, 0
  %1197 = vmatprep.subr.mxu0 0.0
  %1198 = vmatpush1.msra.mxu0 %v1086
  %1199 = vmatprep.subr.mxu0 0.0
  %1200 = vmatpush1.msra.mxu0 %v1087
  %1201 = vmatprep.subr.mxu0 0.0
  %1202 = vmatpush1.msra.mxu0 %v1088
  %1203 = vmatprep.subr.mxu0 0.0
  %1204 = vmatpush1.msra.mxu0 %v1089
  %1205 = vmatprep.subr.mxu0 0.0
  %1206 = vmatpush1.msra.mxu0 %v1090
  %1207 = vmatprep.subr.mxu0 0.0
  %1208 = vmatpush1.msra.mxu0 %v1091
  %1209 = vmatprep.subr.mxu0 0.0
  %1210 = vmatpush1.msra.mxu0 %v1092
  %1211 = vmatprep.subr.mxu0 0.0
  %1212 = vmatpush1.msra.mxu0 %v1093
  %1213 = vmatprep.subr.mxu0 0.0
  %1214 = vmatpush1.msra.mxu0 0.0
  %1215 = vmatprep.subr.mxu0 0.0
  %1216 = vmatpush1.msra.mxu0 0.0
  %1217 = vmatprep.subr.mxu0 0.0
  %1218 = vmatpush1.msra.mxu0 0.0
  %1219 = vmatprep.subr.mxu0 0.0
  %1220 = vmatpush1.msra.mxu0 0.0
  %1221 = vmatprep.subr.mxu0 0.0
  %1222 = vmatpush1.msra.mxu0 0.0
  %1223 = vmatprep.subr.mxu0 0.0
  %1224 = vmatpush1.msra.mxu0 0.0
  %1225 = vmatprep.subr.mxu0 0.0
  %1226 = vmatpush1.msra.mxu0 0.0
  %1227 = vmatprep.subr.mxu0 0.0
  %1228 = vmatpush1.msra.mxu0 0.0
  %1229 = vmatprep.subr.mxu0 0.0
  %1230 = vmatpush1.msra.mxu0 0.0
  %1231 = vmatprep.subr.mxu0 0.0
  %1232 = vmatpush1.msra.mxu0 0.0
  %1233 = vmatprep.subr.mxu0 0.0
  %1234 = vmatpush1.msra.mxu0 0.0
  %1235 = vmatprep.subr.mxu0 0.0
  %1236 = vmatpush1.msra.mxu0 0.0
  %1237 = vmatprep.subr.mxu0 0.0
  %1238 = vmatpush1.msra.mxu0 0.0
  %1239 = vmatprep.subr.mxu0 0.0
  %1240 = vmatpush1.msra.mxu0 0.0
  %1241 = vmatprep.subr.mxu0 0.0
  %1242 = vmatpush1.msra.mxu0 0.0
  %1243 = vmatprep.subr.mxu0 0.0
  %1244 = vmatpush1.msra.mxu0 0.0
  %1245 = vmatprep.subr.mxu0 0.0
  %1246 = vmatpush1.msra.mxu0 0.0
  %1247 = vmatprep.subr.mxu0 0.0
  %1248 = vmatpush1.msra.mxu0 0.0
  %1249 = vmatprep.subr.mxu0 0.0
  %1250 = vmatpush1.msra.mxu0 0.0
  %1251 = vmatprep.subr.mxu0 0.0
  %1252 = vmatpush1.msra.mxu0 0.0
  %1253 = vmatprep.subr.mxu0 0.0
  %1254 = vmatpush1.msra.mxu0 0.0
  %1255 = vmatprep.subr.mxu0 0.0
  %1256 = vmatpush1.msra.mxu0 0.0
  %1257 = vmatprep.subr.mxu0 0.0
  %1258 = vmatpush1.msra.mxu0 0.0
  %1259 = vmatprep.subr.mxu0 0.0
  %1260 = vmatpush1.msra.mxu0 0.0
  %1261 = vmatprep.mubr.f32.mxu0 0.0
  %1262 = vmatmul.mubr.f32.gmra.mrb[0].mxu0 %v1102
  %v1263 = vpop.f32.mrb[0].mxu0
  %v1264 = vadd.f32 %v1099, %v1263
  %v1265 = vpop.f32.mrb[0].mxu0
  %1266 = vmatprep.mubr.f32.mxu0 0.0
  %1267 = vmatmul.mubr.f32.gmra.mrb[0].mxu0 %v1105
  %v1268 = vpop.f32.mrb[0].mxu0
  %v1269 = vadd.f32 %v1099, %v1268
  %v1270 = vpop.f32.mrb[0].mxu0
  %1271 = vmatprep.mubr.f32.mxu0 0.0
  %1272 = vmatmul.mubr.f32.gmra.mrb[0].mxu0 %v1108
  %v1273 = vpop.f32.mrb[0].mxu0
  %v1274 = vadd.f32 %v1099, %v1273
  %v1275 = vpop.f32.mrb[0].mxu0
  %1276 = vmatprep.mubr.f32.mxu0 0.0
  %1277 = vmatmul.mubr.f32.gmra.mrb[0].mxu0 %v1111
  %v1278 = vpop.f32.mrb[0].mxu0
  %v1279 = vadd.f32 %v1099, %v1278
  %v1280 = vpop.f32.mrb[0].mxu0
  %1281 = vmatprep.mubr.f32.mxu0 0.0
  %1282 = vmatmul.mubr.f32.gmra.mrb[0].mxu0 %v1114
  %v1283 = vpop.f32.mrb[0].mxu0
  %v1284 = vadd.f32 %v1099, %v1283
  %v1285 = vpop.f32.mrb[0].mxu0
  %1286 = vmatprep.mubr.f32.mxu0 0.0
  %1287 = vmatmul.mubr.f32.gmra.mrb[0].mxu0 %v1117
  %v1288 = vpop.f32.mrb[0].mxu0
  %v1289 = vadd.f32 %v1099, %v1288
  %v1290 = vpop.f32.mrb[0].mxu0
  %1291 = vmatprep.mubr.f32.mxu0 0.0
  %1292 = vmatmul.mubr.f32.gmra.mrb[0].mxu0 %v1120
  %v1293 = vpop.f32.mrb[0].mxu0
  %v1294 = vadd.f32 %v1099, %v1293
  %v1295 = vpop.f32.mrb[0].mxu0
  %1296 = vmatprep.mubr.f32.mxu0 0.0
  %1297 = vmatmul.mubr.f32.gmra.mrb[0].mxu0 %v1123
  %v1298 = vpop.f32.mrb[0].mxu0
  %v1299 = vadd.f32 %v1099, %v1298
  %v1300 = vpop.f32.mrb[0].mxu0
  %1301 = vmatprep.mubr.f32.mxu0 0.0
  %1302 = vmatmul.mubr.f32.gmra.mrb[0].mxu0 %v1126
  %v1303 = vpop.f32.mrb[0].mxu0
  %v1304 = vadd.f32 %v1099, %v1303
  %v1305 = vpop.f32.mrb[0].mxu0
  %1306 = vmatprep.mubr.f32.mxu0 0.0
  %1307 = vmatmul.mubr.f32.gmra.mrb[0].mxu0 %v1129
  %v1308 = vpop.f32.mrb[0].mxu0
  %v1309 = vadd.f32 %v1099, %v1308
  %v1310 = vpop.f32.mrb[0].mxu0
  %1311 = vmatprep.mubr.f32.mxu0 0.0
  %1312 = vmatmul.mubr.f32.gmra.mrb[0].mxu0 %v1132
  %v1313 = vpop.f32.mrb[0].mxu0
  %v1314 = vadd.f32 %v1099, %v1313
  %v1315 = vpop.f32.mrb[0].mxu0
  %1316 = vmatprep.mubr.f32.mxu0 0.0
  %1317 = vmatmul.mubr.f32.gmra.mrb[0].mxu0 %v1135
  %v1318 = vpop.f32.mrb[0].mxu0
  %v1319 = vadd.f32 %v1099, %v1318
  %v1320 = vpop.f32.mrb[0].mxu0
  %1321 = vmatprep.mubr.f32.mxu0 0.0
  %1322 = vmatmul.mubr.f32.gmra.mrb[0].mxu0 %v1138
  %v1323 = vpop.f32.mrb[0].mxu0
  %v1324 = vadd.f32 %v1099, %v1323
  %v1325 = vpop.f32.mrb[0].mxu0
  %1326 = vmatprep.mubr.f32.mxu0 0.0
  %1327 = vmatmul.mubr.f32.gmra.mrb[0].mxu0 %v1141
  %v1328 = vpop.f32.mrb[0].mxu0
  %v1329 = vadd.f32 %v1099, %v1328
  %v1330 = vpop.f32.mrb[0].mxu0
  %1331 = vmatprep.mubr.f32.mxu0 0.0
  %1332 = vmatmul.mubr.f32.gmra.mrb[0].mxu0 %v1144
  %v1333 = vpop.f32.mrb[0].mxu0
  %v1334 = vadd.f32 %v1099, %v1333
  %v1335 = vpop.f32.mrb[0].mxu0
  %1336 = vmatprep.mubr.f32.mxu0 0.0
  %1337 = vmatmul.mubr.f32.gmra.mrb[0].mxu0 %v1147
  %v1338 = vpop.f32.mrb[0].mxu0
  %v1339 = vadd.f32 %v1099, %v1338
  %v1340 = vpop.f32.mrb[0].mxu0
  %1341 = vmatprep.mubr.f32.mxu0 0.0
  %1342 = vmatmul.mubr.f32.gmra.mrb[0].mxu0 %v1150
  %v1343 = vpop.f32.mrb[0].mxu0
  %v1344 = vadd.f32 %v1099, %v1343
  %v1345 = vpop.f32.mrb[0].mxu0
  %1346 = vmatprep.mubr.f32.mxu0 0.0
  %1347 = vmatmul.mubr.f32.gmra.mrb[0].mxu0 %v1153
  %v1348 = vpop.f32.mrb[0].mxu0
  %v1349 = vadd.f32 %v1099, %v1348
  %v1350 = vpop.f32.mrb[0].mxu0
  %1351 = vmatprep.mubr.f32.mxu0 0.0
  %1352 = vmatmul.mubr.f32.gmra.mrb[0].mxu0 %v1156
  %v1353 = vpop.f32.mrb[0].mxu0
  %v1354 = vadd.f32 %v1099, %v1353
  %v1355 = vpop.f32.mrb[0].mxu0
  %1356 = vmatprep.mubr.f32.mxu0 0.0
  %1357 = vmatmul.mubr.f32.gmra.mrb[0].mxu0 %v1159
  %v1358 = vpop.f32.mrb[0].mxu0
  %v1359 = vadd.f32 %v1099, %v1358
  %v1360 = vpop.f32.mrb[0].mxu0
  %1361 = vmatprep.mubr.f32.mxu0 0.0
  %1362 = vmatmul.mubr.f32.gmra.mrb[0].mxu0 %v1162
  %v1363 = vpop.f32.mrb[0].mxu0
  %v1364 = vadd.f32 %v1099, %v1363
  %v1365 = vpop.f32.mrb[0].mxu0
  %1366 = vmatprep.mubr.f32.mxu0 0.0
  %1367 = vmatmul.mubr.f32.gmra.mrb[0].mxu0 %v1165
  %v1368 = vpop.f32.mrb[0].mxu0
  %v1369 = vadd.f32 %v1099, %v1368
  %v1370 = vpop.f32.mrb[0].mxu0
  %1371 = vmatprep.mubr.f32.mxu0 0.0
  %1372 = vmatmul.mubr.f32.gmra.mrb[0].mxu0 %v1168
  %v1373 = vpop.f32.mrb[0].mxu0
  %v1374 = vadd.f32 %v1099, %v1373
  %v1375 = vpop.f32.mrb[0].mxu0
  %1376 = vmatprep.mubr.f32.mxu0 0.0
  %1377 = vmatmul.mubr.f32.gmra.mrb[0].mxu0 %v1171
  %v1378 = vpop.f32.mrb[0].mxu0
  %v1379 = vadd.f32 %v1099, %v1378
  %v1380 = vpop.f32.mrb[0].mxu0
  %1381 = vmatprep.mubr.f32.mxu0 0.0
  %1382 = vmatmul.mubr.f32.gmra.mrb[0].mxu0 %v1174
  %v1383 = vpop.f32.mrb[0].mxu0
  %v1384 = vadd.f32 %v1099, %v1383
  %v1385 = vpop.f32.mrb[0].mxu0
  %1386 = vmatprep.mubr.f32.mxu0 0.0
  %1387 = vmatmul.mubr.f32.gmra.mrb[0].mxu0 %v1177
  %v1388 = vpop.f32.mrb[0].mxu0
  %v1389 = vadd.f32 %v1099, %v1388
  %v1390 = vpop.f32.mrb[0].mxu0
  %1391 = vmatprep.mubr.f32.mxu0 0.0
  %1392 = vmatmul.mubr.f32.gmra.mrb[0].mxu0 %v1180
  %v1393 = vpop.f32.mrb[0].mxu0
  %v1394 = vadd.f32 %v1099, %v1393
  %v1395 = vpop.f32.mrb[0].mxu0
  %1396 = vmatprep.mubr.f32.mxu0 0.0
  %1397 = vmatmul.mubr.f32.gmra.mrb[0].mxu0 %v1183
  %v1398 = vpop.f32.mrb[0].mxu0
  %v1399 = vadd.f32 %v1099, %v1398
  %v1400 = vpop.f32.mrb[0].mxu0
  %1401 = vmatprep.mubr.f32.mxu0 0.0
  %1402 = vmatmul.mubr.f32.gmra.mrb[0].mxu0 %v1186
  %v1403 = vpop.f32.mrb[0].mxu0
  %v1404 = vadd.f32 %v1099, %v1403
  %v1405 = vpop.f32.mrb[0].mxu0
  %1406 = vmatprep.mubr.f32.mxu0 0.0
  %1407 = vmatmul.mubr.f32.gmra.mrb[0].mxu0 %v1189
  %v1408 = vpop.f32.mrb[0].mxu0
  %v1409 = vadd.f32 %v1099, %v1408
  %v1410 = vpop.f32.mrb[0].mxu0
  %1411 = vmatprep.mubr.f32.mxu0 0.0
  %1412 = vmatmul.mubr.f32.gmra.mrb[0].mxu0 %v1192
  %v1413 = vpop.f32.mrb[0].mxu0
  %v1414 = vadd.f32 %v1099, %v1413
  %v1415 = vpop.f32.mrb[0].mxu0
  %1416 = vmatprep.mubr.f32.mxu0 0.0
  %1417 = vmatmul.mubr.f32.gmra.mrb[0].mxu0 %v1195
  %v1418 = vpop.f32.mrb[0].mxu0
  %v1419 = vadd.f32 %v1099, %v1418
  %v1420 = vpop.f32.mrb[0].mxu0
  %1421 = vdwg.mxu0
  %v1422 = vtanh.pop %v1264
  %v1423 = vtanh.pop %v1269
  %v1424 = vtanh.pop %v1274
  %v1425 = vtanh.pop %v1279
  %v1426 = vtanh.pop %v1284
  %v1427 = vtanh.pop %v1289
  %v1428 = vtanh.pop %v1294
  %v1429 = vtanh.pop %v1299
  %v1430 = vtanh.pop %v1304
  %v1431 = vtanh.pop %v1309
  %v1432 = vtanh.pop %v1314
  %v1433 = vtanh.pop %v1319
  %v1434 = vtanh.pop %v1324
  %v1435 = vtanh.pop %v1329
  %v1436 = vtanh.pop %v1334
  %v1437 = vtanh.pop %v1339
  %v1438 = vtanh.pop %v1344
  %v1439 = vtanh.pop %v1349
  %v1440 = vtanh.pop %v1354
  %v1441 = vtanh.pop %v1359
  %v1442 = vtanh.pop %v1364
  %v1443 = vtanh.pop %v1369
  %v1444 = vtanh.pop %v1374
  %v1445 = vtanh.pop %v1379
  %v1446 = vtanh.pop %v1384
  %v1447 = vtanh.pop %v1389
  %v1448 = vtanh.pop %v1394
  %v1449 = vtanh.pop %v1399
  %v1450 = vtanh.pop %v1404
  %v1451 = vtanh.pop %v1409
  %v1452 = vtanh.pop %v1414
  %v1453 = vtanh.pop %v1419
  %1454 = vst [vmem:[%s9] sm:$0xff] %v1422
  %1455 = vst [vmem:[%s9 + $0x8] sm:$0xff] %v1423
  %1456 = vst [vmem:[%s9 + $0x10] sm:$0xff] %v1424
  %1457 = vst [vmem:[%s9 + $0x18] sm:$0xff] %v1425
  %1458 = vst [vmem:[%s9 + $0x20] sm:$0xff] %v1426
  %1459 = vst [vmem:[%s9 + $0x28] sm:$0xff] %v1427
  %1460 = vst [vmem:[%s9 + $0x30] sm:$0xff] %v1428
  %1461 = vst [vmem:[%s9 + $0x38] sm:$0xff] %v1429
  %1462 = vst [vmem:[%s9 + $0x40] sm:$0xff] %v1430
  %1463 = vst [vmem:[%s9 + $0x48] sm:$0xff] %v1431
  %1464 = vst [vmem:[%s9 + $0x50] sm:$0xff] %v1432
  %1465 = vst [vmem:[%s9 + $0x58] sm:$0xff] %v1433
  %1466 = vst [vmem:[%s9 + $0x60] sm:$0xff] %v1434
  %1467 = vst [vmem:[%s9 + $0x68] sm:$0xff] %v1435
  %1468 = vst [vmem:[%s9 + $0x70] sm:$0xff] %v1436
  %1469 = vst [vmem:[%s9 + $0x78] sm:$0xff] %v1437
  %1470 = vst [vmem:[%s9 + $0x80] sm:$0xff] %v1438
  %1471 = vst [vmem:[%s9 + $0x88] sm:$0xff] %v1439
  %1472 = vst [vmem:[%s9 + $0x90] sm:$0xff] %v1440
  %1473 = vst [vmem:[%s9 + $0x98] sm:$0xff] %v1441
  %1474 = vst [vmem:[%s9 + $0xa0] sm:$0xff] %v1442
  %1475 = vst [vmem:[%s9 + $0xa8] sm:$0xff] %v1443
  %1476 = vst [vmem:[%s9 + $0xb0] sm:$0xff] %v1444
  %1477 = vst [vmem:[%s9 + $0xb8] sm:$0xff] %v1445
  %1478 = vst [vmem:[%s9 + $0xc0] sm:$0xff] %v1446
  %1479 = vst [vmem:[%s9 + $0xc8] sm:$0xff] %v1447
  %1480 = vst [vmem:[%s9 + $0xd0] sm:$0xff] %v1448
  %1481 = vst [vmem:[%s9 + $0xd8] sm:$0xff] %v1449
  %1482 = vst [vmem:[%s9 + $0xe0] sm:$0xff] %v1450
  %1483 = vst [vmem:[%s9 + $0xe8] sm:$0xff] %v1451
  %1484 = vst [vmem:[%s9 + $0xf0] sm:$0xff] %v1452
  %1485 = vst [vmem:[%s9 + $0xf8] sm:$0xff] %v1453
  // Predicated region
  $region38: #{mlp_extractor_aux.1} parent=0 // pred_check
    _
  $region39: #{mlp_extractor_aux.1} parent=0 // pred_check_branch
    %1487 = sbr.rel (0) target = $region41
  $region40: #{mlp_extractor_aux.1} parent=0 // pred_region
    _
  $region41: #{mlp_extractor_aux.1} parent=0 // pred_fallthru
    _
  // Predicated region
  $region42: #{mlp_extractor_aux.1} parent=0 // pred_check
    _
  $region43: #{mlp_extractor_aux.1} parent=0 // pred_check_branch
    %1489 = sbr.rel (0) target = $region45
  $region44: #{mlp_extractor_aux.1} parent=0 // pred_region
    _
  $region45: #{mlp_extractor_aux.1} parent=0 // pred_fallthru
    _

</llo_original>
